<compile_context>
chip_gen: v6e
topology: v6e:2x2x1
jax: 0.10.0
libtpu: 0.0.40
codegen_flags: <defaults>
</compile_context>

<pallas_src>
import functools

import jax
import jax.numpy as jnp
from jax.experimental import pallas as pl
from jax.experimental.pallas import tpu as pltpu


def _inr_kernel(x_ref, wt_ref, p_ref, o_ref, *, eps):
    # x_ref:  (tm, D_in)     tile of input rows (native dtype)
    # wt_ref: (D_in, D_out)  pre-transposed Linear weight (native dtype)
    # p_ref:  (3, D_out)     packed [bias; gamma; beta]
    # o_ref:  (tm, D_out)

    # Linear on the MXU: native-dtype operands, f32 accumulation.
    y = jnp.dot(x_ref[...], wt_ref[...], preferred_element_type=jnp.float32)
    y = y + p_ref[0:1, :].astype(jnp.float32)

    # ReLU
    y = jnp.maximum(y, 0.0)

    # Dropout: identity in eval mode.
    # TODO(synk): training-mode stochastic dropout (pltpu.prng_*) not emitted;
    # eval semantics (identity) are reproduced exactly.

    # LayerNorm over the feature axis — two-pass statistics (no cancellation,
    # variance is non-negative by construction).
    inv_d = 1.0 / y.shape[-1]
    mean = jnp.sum(y, axis=-1, keepdims=True) * inv_d
    yc = y - mean
    var = jnp.sum(yc * yc, axis=-1, keepdims=True) * inv_d
    inv_std = jax.lax.rsqrt(var + eps)

    gamma = p_ref[1:2, :].astype(jnp.float32)
    beta = p_ref[2:3, :].astype(jnp.float32)
    o_ref[...] = (yc * inv_std * gamma + beta).astype(o_ref.dtype)


def _round_up(x, m):
    return (x + m - 1) // m * m


def _vmem_budget():
    """Generation-aware (working-set budget, vmem_limit cap) in bytes."""
    try:
        cap = pltpu.get_tpu_info().vmem_capacity_bytes or (64 << 20)
    except Exception:
        cap = 64 << 20  # conservative: assume the smallest (v7x-sized) VMEM
    if cap >= (96 << 20):                # v5e / v6e: 128 MiB physical
        return 88 << 20, 100 << 20
    return 40 << 20, 48 << 20            # v7x: 64 MiB physical


def _choose_row_tile(d_in, d_out, x_bytes, w_bytes, o_bytes, budget_bytes,
                     max_tile=2048):
    """Largest row tile (multiple of 8, capped) whose pipelined VMEM footprint
    (2x x tile + 2x out tile + f32 temporaries) plus the single-buffered weight
    and packed params fits the budget."""
    weight_bytes = d_in * d_out * w_bytes      # single-buffered (constant index)
    params_bytes = 8 * d_out * 4               # (3, D_out) sublane-padded, f32 bound
    per_row = (2 * d_in * x_bytes              # double-buffered x tile
               + 2 * d_out * o_bytes           # double-buffered out tile
               + 4 * d_out * 4)                # f32 temporaries / accumulator
    avail = budget_bytes - weight_bytes - params_bytes - (512 << 10)
    if avail < 8 * per_row:
        # TODO(synk): add a D_out grid axis (N-tiling with LayerNorm stats
        # accumulated in scratch) for weights that do not fit VMEM alongside a
        # useful row tile, instead of degrading to tiny tiles.
        raise ValueError(
            f"INR weight ({weight_bytes / 2**20:.1f} MiB) too large for the "
            f"{budget_bytes / 2**20:.0f} MiB VMEM budget; tile D_out instead.")
    tm = min(max_tile, avail // per_row)
    return int(tm) // 8 * 8


def _build_inr_call(rows, d_in, d_out, row_tile, x_dtype, w_dtype, out_dtype,
                    eps, vmem_limit, single_buffer_consts):
    n_tiles = pl.cdiv(rows, row_tile)

    const_kwargs = {}
    if single_buffer_consts:
        # Constant index_map -> one resident buffer is enough; frees VMEM.
        const_kwargs = dict(pipeline_mode=pl.Buffered(1))

    in_specs = [
        pl.BlockSpec((row_tile, d_in), lambda i: (i, 0)),
        pl.BlockSpec((d_in, d_out), lambda i: (0, 0), **const_kwargs),
        pl.BlockSpec((3, d_out), lambda i: (0, 0), **const_kwargs),
    ]
    out_spec = pl.BlockSpec((row_tile, d_out), lambda i: (i, 0))

    cost = pl.CostEstimate(
        flops=2 * rows * d_in * d_out,
        transcendentals=0,
        bytes_accessed=(rows * (d_in * x_dtype.itemsize
                                + d_out * out_dtype.itemsize)
                        + (d_in + 3) * d_out * w_dtype.itemsize),
    )

    return pl.pallas_call(
        functools.partial(_inr_kernel, eps=eps),
        out_shape=jax.ShapeDtypeStruct((rows, d_out), out_dtype),
        grid_spec=pltpu.PrefetchScalarGridSpec(
            num_scalar_prefetch=0,
            grid=(n_tiles,),
            in_specs=in_specs,
            out_specs=out_spec,
        ),
        compiler_params=pltpu.CompilerParams(
            dimension_semantics=("parallel",),
            vmem_limit_bytes=vmem_limit,
        ),
        cost_estimate=cost,
    )


def inr_layer(x, weight_t, bias, gamma, beta, *, eps=1e-5, row_tile=None):
    """INRLayer forward.

    x:        (..., D_in)
    weight_t: (D_in, D_out)  torch nn.Linear weight, pre-transposed once at init.
    bias, gamma, beta: (D_out,)
    Returns:  (..., D_out) in x.dtype
    """
    d_in, d_out = weight_t.shape
    assert x.shape[-1] == d_in
    lead_shape = x.shape[:-1]
    rows = 1
    for s in lead_shape:
        rows *= s

    x2d = x.reshape(rows, d_in)
    params = jnp.stack([bias, gamma, beta], axis=0)   # (3, D_out), one operand

    x_bytes = x2d.dtype.itemsize
    w_bytes = weight_t.dtype.itemsize
    o_bytes = x2d.dtype.itemsize

    budget, limit_cap = _vmem_budget()
    if row_tile is None:
        row_tile = _choose_row_tile(d_in, d_out, x_bytes, w_bytes, o_bytes, budget)
    row_tile = max(8, (int(row_tile) // 8) * 8)
    # Keep >= ~4 grid steps so the "parallel" row axis feeds both v7x
    # TensorCores and input/output double-buffering stays active.
    row_tile = min(row_tile, max(8, _round_up(pl.cdiv(rows, 4), 8)))

    footprint = (d_in * d_out * w_bytes          # single-buffered weight
                 + 8 * d_out * 4                 # packed params (padded)
                 + row_tile * (2 * d_in * x_bytes + 2 * d_out * o_bytes
                               + 4 * d_out * 4))
    vmem_limit = int(min(limit_cap, max(16 << 20, int(footprint * 1.5))))

    args = (x2d, weight_t, params)
    try:
        out2d = _build_inr_call(rows, d_in, d_out, row_tile, x2d.dtype,
                                weight_t.dtype, x2d.dtype, eps, vmem_limit,
                                single_buffer_consts=True)(*args)
    except Exception:
        # Fallback: jax version without BlockSpec.pipeline_mode / Buffered(1)
        # support — default double-buffering of the constant operands.
        out2d = _build_inr_call(rows, d_in, d_out, row_tile, x2d.dtype,
                                weight_t.dtype, x2d.dtype, eps, vmem_limit,
                                single_buffer_consts=False)(*args)

    return out2d.reshape(*lead_shape, d_out)


def init_inr_params(key, input_size, output_size, dtype=jnp.float32):
    """Mirrors nn.Linear init (uniform +/- 1/sqrt(fan_in)) and nn.LayerNorm
    (ones / zeros).  The Linear weight is stored pre-transposed (D_in, D_out)
    so the kernel never re-transposes it per call.  For production, pass
    dtype=jnp.bfloat16 (memory-bound kernel: halves HBM traffic, native MXU)."""
    kw, kb = jax.random.split(key)
    bound = 1.0 / (input_size ** 0.5)
    weight_t = jax.random.uniform(
        kw, (input_size, output_size), dtype=dtype, minval=-bound, maxval=bound
    )
    bias = jax.random.uniform(
        kb, (output_size,), dtype=dtype, minval=-bound, maxval=bound
    )
    gamma = jnp.ones((output_size,), dtype=dtype)
    beta = jnp.zeros((output_size,), dtype=dtype)
    return weight_t, bias, gamma, beta


def _reference(x, weight_t, bias, gamma, beta, eps=1e-5):
    y = jnp.maximum(x @ weight_t + bias, 0.0)
    mean = jnp.mean(y, axis=-1, keepdims=True)
    var = jnp.mean((y - mean) ** 2, axis=-1, keepdims=True)
    return (y - mean) / jnp.sqrt(var + eps) * gamma + beta


if __name__ == "__main__":
    key = jax.random.PRNGKey(0)
    k_x, k_p = jax.random.split(key)

    # Small but representative shapes: lane-dense feature dims (multiple of
    # 128) and a row count (2*200=400) that does NOT divide the row tile, so
    # the multi-step grid + ragged last block (no host-side padding) path is
    # exercised.
    batch, seq, input_size, output_size = 2, 200, 128, 128
    x = jax.random.normal(k_x, (batch, seq, input_size), dtype=jnp.float32)
    weight_t, bias, gamma, beta = init_inr_params(k_p, input_size, output_size)

    out = inr_layer(x, weight_t, bias, gamma, beta)
    out = jax.block_until_ready(out)

    ref = _reference(x, weight_t, bias, gamma, beta)
    assert out.shape == (batch, seq, output_size), out.shape
    assert jnp.allclose(out, ref, atol=1e-5, rtol=1e-5), "mismatch vs reference"

    print("KERNEL_OK")
</pallas_src>

<mosaic_0001>
module attributes {stable_mosaic.version = 11 : i64} {
  func.func @_inr_kernel(%arg0: i32, %arg1: memref<104x128xf32, #tpu.memory_space<vmem>>, %arg2: memref<128x128xf32, #tpu.memory_space<vmem>>, %arg3: memref<3x128xf32, #tpu.memory_space<vmem>>, %arg4: memref<104x128xf32, #tpu.memory_space<vmem>>) attributes {dimension_semantics = [#tpu.dimension_semantics<parallel>], iteration_bounds = array<i64: 4>, scalar_prefetch = 0 : i64, scratch_operands = 0 : i64, tpu.core_type = #tpu.core_type<tc>, window_params = [{transform_indices = @transform_0, window_bounds = array<i64: 104, 128>}, {pipeline_mode = #tpu.pipeline_mode<synchronous>, transform_indices = @transform_1, window_bounds = array<i64: 128, 128>}, {pipeline_mode = #tpu.pipeline_mode<synchronous>, transform_indices = @transform_2, window_bounds = array<i64: 3, 128>}, {transform_indices = @transform_3, window_bounds = array<i64: 104, 128>}]} {
    %c0 = arith.constant 0 : index
    %c0_0 = arith.constant 0 : index
    %0 = vector.load %arg1[%c0, %c0_0] : memref<104x128xf32, #tpu.memory_space<vmem>>, vector<104x128xf32>
    %c0_1 = arith.constant 0 : index
    %c0_2 = arith.constant 0 : index
    %1 = vector.load %arg2[%c0_1, %c0_2] : memref<128x128xf32, #tpu.memory_space<vmem>>, vector<128x128xf32>
    %cst = arith.constant dense<0.000000e+00> : vector<104x128xf32>
    %2 = tpu.matmul %0, %1, %cst {dimension_numbers = #tpu.dot_dimension_numbers<[1], [0], [0], [1], [0, 0, 1, 1], [], []>} : vector<104x128xf32>, vector<128x128xf32>, vector<104x128xf32> -> vector<104x128xf32>
    %c0_3 = arith.constant 0 : index
    %c0_4 = arith.constant 0 : index
    %3 = vector.load %arg3[%c0_3, %c0_4] : memref<3x128xf32, #tpu.memory_space<vmem>>, vector<1x128xf32>
    %4 = vector.broadcast %3 : vector<1x128xf32> to vector<104x128xf32>
    %5 = arith.addf %2, %4 : vector<104x128xf32>
    %cst_5 = arith.constant 0.000000e+00 : f32
    %6 = vector.broadcast %cst_5 : f32 to vector<104x128xf32>
    %7 = arith.maximumf %5, %6 : vector<104x128xf32>
    %cst_6 = arith.constant dense<0.000000e+00> : vector<104xf32>
    %8 = vector.multi_reduction <add>, %7, %cst_6 [1] : vector<104x128xf32> to vector<104xf32>
    %9 = vector.shape_cast %8 : vector<104xf32> to vector<104x1xf32>
    %cst_7 = arith.constant 7.812500e-03 : f32
    %10 = vector.broadcast %cst_7 : f32 to vector<104x1xf32>
    %11 = arith.mulf %9, %10 : vector<104x1xf32>
    %12 = vector.broadcast %11 : vector<104x1xf32> to vector<104x128xf32>
    %13 = arith.subf %7, %12 : vector<104x128xf32>
    %14 = arith.mulf %13, %13 : vector<104x128xf32>
    %cst_8 = arith.constant dense<0.000000e+00> : vector<104xf32>
    %15 = vector.multi_reduction <add>, %14, %cst_8 [1] : vector<104x128xf32> to vector<104xf32>
    %16 = vector.shape_cast %15 : vector<104xf32> to vector<104x1xf32>
    %cst_9 = arith.constant 7.812500e-03 : f32
    %17 = vector.broadcast %cst_9 : f32 to vector<104x1xf32>
    %18 = arith.mulf %16, %17 : vector<104x1xf32>
    %cst_10 = arith.constant 9.99999974E-6 : f32
    %19 = vector.broadcast %cst_10 : f32 to vector<104x1xf32>
    %20 = arith.addf %18, %19 : vector<104x1xf32>
    %21 = math.rsqrt %20 : vector<104x1xf32>
    %c1 = arith.constant 1 : index
    %c0_11 = arith.constant 0 : index
    %22 = vector.load %arg3[%c1, %c0_11] : memref<3x128xf32, #tpu.memory_space<vmem>>, vector<1x128xf32>
    %c2 = arith.constant 2 : index
    %c0_12 = arith.constant 0 : index
    %23 = vector.load %arg3[%c2, %c0_12] : memref<3x128xf32, #tpu.memory_space<vmem>>, vector<1x128xf32>
    %24 = vector.broadcast %21 : vector<104x1xf32> to vector<104x128xf32>
    %25 = arith.mulf %13, %24 : vector<104x128xf32>
    %26 = vector.broadcast %22 : vector<1x128xf32> to vector<104x128xf32>
    %27 = arith.mulf %25, %26 : vector<104x128xf32>
    %28 = vector.broadcast %23 : vector<1x128xf32> to vector<104x128xf32>
    %29 = arith.addf %27, %28 : vector<104x128xf32>
    %c0_13 = arith.constant 0 : index
    %c0_14 = arith.constant 0 : index
    %30 = vector.load %arg4[%c0_13, %c0_14] : memref<104x128xf32, #tpu.memory_space<vmem>>, vector<104x128xf32>
    tpu.vector_store %arg4[%c0_13, %c0_14], %29 {strides = array<i32>} : memref<104x128xf32, #tpu.memory_space<vmem>>, vector<104x128xf32>,
    return
  }
  func.func @transform_0(%arg0: i32) -> (i32, i32) {
    %c0_i32 = arith.constant 0 : i32
    %c0_i32_0 = arith.constant 0 : i32
    return %arg0, %c0_i32 : i32, i32
  }
  func.func @transform_1(%arg0: i32) -> (i32, i32) {
    %c0_i32 = arith.constant 0 : i32
    %c0_i32_0 = arith.constant 0 : i32
    %c0_i32_1 = arith.constant 0 : i32
    return %c0_i32, %c0_i32_0 : i32, i32
  }
  func.func @transform_2(%arg0: i32) -> (i32, i32) {
    %c0_i32 = arith.constant 0 : i32
    %c0_i32_0 = arith.constant 0 : i32
    %c0_i32_1 = arith.constant 0 : i32
    return %c0_i32, %c0_i32_0 : i32, i32
  }
  func.func @transform_3(%arg0: i32) -> (i32, i32) {
    %c0_i32 = arith.constant 0 : i32
    %c0_i32_0 = arith.constant 0 : i32
    return %arg0, %c0_i32 : i32, i32
  }
}

module attributes {stable_mosaic.version = 11 : i64} {
  func.func @_inr_kernel(%arg0: i32, %arg1: memref<104x128xf32, #tpu.memory_space<vmem>>, %arg2: memref<128x128xf32, #tpu.memory_space<vmem>>, %arg3: memref<3x128xf32, #tpu.memory_space<vmem>>, %arg4: memref<104x128xf32, #tpu.memory_space<vmem>>) attributes {dimension_semantics = [#tpu.dimension_semantics<parallel>], iteration_bounds = array<i64: 4>, scalar_prefetch = 0 : i64, scratch_operands = 0 : i64, tpu.core_type = #tpu.core_type<tc>, window_params = [{transform_indices = @transform_0, window_bounds = array<i64: 104, 128>}, {pipeline_mode = #tpu.pipeline_mode<synchronous>, transform_indices = @transform_1, window_bounds = array<i64: 128, 128>}, {pipeline_mode = #tpu.pipeline_mode<synchronous>, transform_indices = @transform_2, window_bounds = array<i64: 3, 128>}, {transform_indices = @transform_3, window_bounds = array<i64: 104, 128>}]} {
    %c0 = arith.constant 0 : index
    %c0_0 = arith.constant 0 : index
    %0 = vector.load %arg1[%c0, %c0_0] : memref<104x128xf32, #tpu.memory_space<vmem>>, vector<104x128xf32>
    %c0_1 = arith.constant 0 : index
    %c0_2 = arith.constant 0 : index
    %1 = vector.load %arg2[%c0_1, %c0_2] : memref<128x128xf32, #tpu.memory_space<vmem>>, vector<128x128xf32>
    %cst = arith.constant dense<0.000000e+00> : vector<104x128xf32>
    %2 = tpu.matmul %0, %1, %cst {dimension_numbers = #tpu.dot_dimension_numbers<[1], [0], [0], [1], [0, 0, 1, 1], [], []>} : vector<104x128xf32>, vector<128x128xf32>, vector<104x128xf32> -> vector<104x128xf32>
    %c0_3 = arith.constant 0 : index
    %c0_4 = arith.constant 0 : index
    %3 = vector.load %arg3[%c0_3, %c0_4] : memref<3x128xf32, #tpu.memory_space<vmem>>, vector<1x128xf32>
    %4 = vector.broadcast %3 : vector<1x128xf32> to vector<104x128xf32>
    %5 = arith.addf %2, %4 : vector<104x128xf32>
    %cst_5 = arith.constant 0.000000e+00 : f32
    %6 = vector.broadcast %cst_5 : f32 to vector<104x128xf32>
    %7 = arith.maximumf %5, %6 : vector<104x128xf32>
    %cst_6 = arith.constant dense<0.000000e+00> : vector<104xf32>
    %8 = vector.multi_reduction <add>, %7, %cst_6 [1] : vector<104x128xf32> to vector<104xf32>
    %9 = vector.shape_cast %8 : vector<104xf32> to vector<104x1xf32>
    %cst_7 = arith.constant 7.812500e-03 : f32
    %10 = vector.broadcast %cst_7 : f32 to vector<104x1xf32>
    %11 = arith.mulf %9, %10 : vector<104x1xf32>
    %12 = vector.broadcast %11 : vector<104x1xf32> to vector<104x128xf32>
    %13 = arith.subf %7, %12 : vector<104x128xf32>
    %14 = arith.mulf %13, %13 : vector<104x128xf32>
    %cst_8 = arith.constant dense<0.000000e+00> : vector<104xf32>
    %15 = vector.multi_reduction <add>, %14, %cst_8 [1] : vector<104x128xf32> to vector<104xf32>
    %16 = vector.shape_cast %15 : vector<104xf32> to vector<104x1xf32>
    %cst_9 = arith.constant 7.812500e-03 : f32
    %17 = vector.broadcast %cst_9 : f32 to vector<104x1xf32>
    %18 = arith.mulf %16, %17 : vector<104x1xf32>
    %cst_10 = arith.constant 9.99999974E-6 : f32
    %19 = vector.broadcast %cst_10 : f32 to vector<104x1xf32>
    %20 = arith.addf %18, %19 : vector<104x1xf32>
    %21 = math.rsqrt %20 : vector<104x1xf32>
    %c1 = arith.constant 1 : index
    %c0_11 = arith.constant 0 : index
    %22 = vector.load %arg3[%c1, %c0_11] : memref<3x128xf32, #tpu.memory_space<vmem>>, vector<1x128xf32>
    %c2 = arith.constant 2 : index
    %c0_12 = arith.constant 0 : index
    %23 = vector.load %arg3[%c2, %c0_12] : memref<3x128xf32, #tpu.memory_space<vmem>>, vector<1x128xf32>
    %24 = vector.broadcast %21 : vector<104x1xf32> to vector<104x128xf32>
    %25 = arith.mulf %13, %24 : vector<104x128xf32>
    %26 = vector.broadcast %22 : vector<1x128xf32> to vector<104x128xf32>
    %27 = arith.mulf %25, %26 : vector<104x128xf32>
    %28 = vector.broadcast %23 : vector<1x128xf32> to vector<104x128xf32>
    %29 = arith.addf %27, %28 : vector<104x128xf32>
    %c0_13 = arith.constant 0 : index
    %c0_14 = arith.constant 0 : index
    %30 = vector.load %arg4[%c0_13, %c0_14] : memref<104x128xf32, #tpu.memory_space<vmem>>, vector<104x128xf32>
    tpu.vector_store %arg4[%c0_13, %c0_14], %29 {strides = array<i32>} : memref<104x128xf32, #tpu.memory_space<vmem>>, vector<104x128xf32>,
    return
  }
  func.func @transform_0(%arg0: i32) -> (i32, i32) {
    %c0_i32 = arith.constant 0 : i32
    %c0_i32_0 = arith.constant 0 : i32
    return %arg0, %c0_i32 : i32, i32
  }
  func.func @transform_1(%arg0: i32) -> (i32, i32) {
    %c0_i32 = arith.constant 0 : i32
    %c0_i32_0 = arith.constant 0 : i32
    %c0_i32_1 = arith.constant 0 : i32
    return %c0_i32, %c0_i32_0 : i32, i32
  }
  func.func @transform_2(%arg0: i32) -> (i32, i32) {
    %c0_i32 = arith.constant 0 : i32
    %c0_i32_0 = arith.constant 0 : i32
    %c0_i32_1 = arith.constant 0 : i32
    return %c0_i32, %c0_i32_0 : i32, i32
  }
  func.func @transform_3(%arg0: i32) -> (i32, i32) {
    %c0_i32 = arith.constant 0 : i32
    %c0_i32_0 = arith.constant 0 : i32
    return %arg0, %c0_i32 : i32, i32
  }
}

</mosaic_0001>

<llo_original>
// kernel: tpu_custom_call.1
$region0: #{tpu_custom_call.1}
  #allocation0 [shape = 'u32[]', space=smem, size = 0x4, offset = 0x4, fixed_abs, tag = 'smem constant byte address 0x4 - core index']
  #allocation1 [shape = 'u32[144,128]{1,0:T(1,128)}', space=vmem, size = 0x12000, scoped, tag = 'internal scratch']
  %s0 = inlined_call_operand.hbm [shape: f32[400,128], index: 0, kind: input, shape index: {}]
  %s1 = inlined_call_operand.hbm [shape: f32[128,128], index: 1, kind: input, shape index: {}]
  %s2 = inlined_call_operand.hbm [shape: f32[3,128], index: 2, kind: input, shape index: {}]
  %s3 = inlined_call_operand.hbm [shape: f32[400,128], index: 3, kind: output, shape index: {}]
  %s4 = sld [smem:[#allocation0]]
  $region57: #{tpu_custom_call.1} parent=0
    _
  %s6 = ssub.s32 1, %s4
  %s7 = scalar_select 0, %s6, %s4
  $region1: #{tpu_custom_call.1} parent=0
    #allocation2 [shape = 'u8[106496]{0}', space=vmem, size = 0x1a000, scoped, tag = 'input window, operand 0']
    #allocation3 [shape = 's32[2]{0}', space=sflag, size = 0x8, scoped, tag = 'scoped memory for tpu_custom_call.1']
    #allocation4 [shape = 's32[2]{0}', space=sflag, size = 0x8, scoped, tag = 'scoped memory for tpu_custom_call.1']
    #allocation5 [shape = 'u8[65536]{0}', space=vmem, size = 0x10000, scoped, tag = 'input window, operand 1, single buffered']
    #allocation6 [shape = 's32[1]{0}', space=sflag, size = 0x4, scoped, tag = 'scoped memory for tpu_custom_call.1']
    #allocation7 [shape = 'u8[2048]{0}', space=vmem, size = 0x800, scoped, tag = 'input window, operand 2, single buffered']
    #allocation8 [shape = 'u8[106496]{0}', space=vmem, size = 0x1a000, scoped, tag = 'output window, operand 0']
    %8 = vsyncpa [#allocation3], 0
    %s9 = scalar_lea.sflag [#allocation3], 1
    %10 = vsyncpa %s9, 0
    %11 = vsyncpa [#allocation6], 0
    %12 = vsyncpa [#allocation4], 0
    %s13 = scalar_lea.sflag [#allocation4], 1
    %14 = vsyncpa %s13, 0
    loop: start=0, step=1, limit=6
    $region2: #{tpu_custom_call.1} parent=1 // loop_pre_header
      _
    $region3: #{tpu_custom_call.1} parent=1 // loop_header
      %s16 = sphi 0, %s20
      %p17 = scmp.ge.s32.totalorder %s16, 6
      %s26 = sphi 0, %s28
      %s29 = sphi 0, %s26
      %s30 = sphi 0, %s29
      %s46 = sphi 0, %s30
      %s50 = sphi 0, %s50
      %s52 = sphi 0, %s50
      %s53 = sphi 0, %s52
      %s67 = sphi 0, %s53
      %s71 = sphi 0, %s71
      %s73 = sphi 0, %s71
      %s74 = sphi 0, %s73
      %s88 = sphi 0, %s74
      %s94 = sphi 0, %s96
      %s97 = sphi 0, %s94
      %s98 = sphi 0, %s97
      %s114 = sphi 0, %s98
    $region4: #{tpu_custom_call.1} parent=1 // loop_header_branch
      %19 = sbr.rel (%p17) target = $region8
    $region5: #{tpu_custom_call.1} parent=1 // loop_body
      %s21 = ssub.s32 %s16, 1
      %s22 = ssub.s32 %s16, 2
      %s23 = sadd.s32 %s16, 1
      %s24 = ssub.s32 %s16, %s23
      %p25 = scmp.eq.s32.totalorder %s24, 0
      %s27 = sadd.s32 %s26, 1
      %s28 = scalar_select %p25, %s26, %s27
      %p31 = pneg %p25
      %p32 = scmp.eq.s32.totalorder %s16, 3
      %p33 = por %p31, %p32
      %p34 = scmp.ne.s32.totalorder %s26, %s29
      %p35 = scmp.eq.s32.totalorder %s16, 0
      %p36 = por %p34, %p35
      %p37 = scmp.ne.s32.totalorder %s26, %s29
      %p38 = scmp.eq.s32.totalorder %s21, 3
      %p39 = por %p37, %p38
      %p40 = scmp.ne.s32.totalorder %s29, %s30
      %p41 = scmp.eq.s32.totalorder %s21, 0
      %p42 = por %p40, %p41
      %p43 = scmp.ne.s32.totalorder %s29, %s30
      %p44 = scmp.eq.s32.totalorder %s22, 3
      %p45 = por %p43, %p44
      %p47 = scmp.ne.s32.totalorder %s30, %s46
      %p48 = scmp.eq.s32.totalorder %s22, 0
      %p49 = por %p47, %p48
      %s51 = sadd.s32 %s50, 1
      %p54 = scmp.eq.s32.totalorder %s16, 3
      %p55 = scmp.ne.s32.totalorder %s50, %s52
      %p56 = scmp.eq.s32.totalorder %s16, 0
      %p57 = por %p55, %p56
      %p58 = scmp.ne.s32.totalorder %s50, %s52
      %p59 = scmp.eq.s32.totalorder %s21, 3
      %p60 = por %p58, %p59
      %p61 = scmp.ne.s32.totalorder %s52, %s53
      %p62 = scmp.eq.s32.totalorder %s21, 0
      %p63 = por %p61, %p62
      %p64 = scmp.ne.s32.totalorder %s52, %s53
      %p65 = scmp.eq.s32.totalorder %s22, 3
      %p66 = por %p64, %p65
      %p68 = scmp.ne.s32.totalorder %s53, %s67
      %p69 = scmp.eq.s32.totalorder %s22, 0
      %p70 = por %p68, %p69
      %s72 = sadd.s32 %s71, 1
      %p75 = scmp.eq.s32.totalorder %s16, 3
      %p76 = scmp.ne.s32.totalorder %s71, %s73
      %p77 = scmp.eq.s32.totalorder %s16, 0
      %p78 = por %p76, %p77
      %p79 = scmp.ne.s32.totalorder %s71, %s73
      %p80 = scmp.eq.s32.totalorder %s21, 3
      %p81 = por %p79, %p80
      %p82 = scmp.ne.s32.totalorder %s73, %s74
      %p83 = scmp.eq.s32.totalorder %s21, 0
      %p84 = por %p82, %p83
      %p85 = scmp.ne.s32.totalorder %s73, %s74
      %p86 = scmp.eq.s32.totalorder %s22, 3
      %p87 = por %p85, %p86
      %p89 = scmp.ne.s32.totalorder %s74, %s88
      %p90 = scmp.eq.s32.totalorder %s22, 0
      %p91 = por %p89, %p90
      %s92 = ssub.s32 %s16, %s23
      %p93 = scmp.eq.s32.totalorder %s92, 0
      %s95 = sadd.s32 %s94, 1
      %s96 = scalar_select %p93, %s94, %s95
      %p99 = pneg %p93
      %p100 = scmp.eq.s32.totalorder %s16, 3
      %p101 = por %p99, %p100
      %p102 = scmp.ne.s32.totalorder %s94, %s97
      %p103 = scmp.eq.s32.totalorder %s16, 0
      %p104 = por %p102, %p103
      %p105 = scmp.ne.s32.totalorder %s94, %s97
      %p106 = scmp.eq.s32.totalorder %s21, 3
      %p107 = por %p105, %p106
      %p108 = scmp.ne.s32.totalorder %s97, %s98
      %p109 = scmp.eq.s32.totalorder %s21, 0
      %p110 = por %p108, %p109
      %p111 = scmp.ne.s32.totalorder %s97, %s98
      %p112 = scmp.eq.s32.totalorder %s22, 3
      %p113 = por %p111, %p112
      %p115 = scmp.ne.s32.totalorder %s98, %s114
      %p116 = scmp.eq.s32.totalorder %s22, 0
      %p117 = por %p115, %p116
      %p118 = scmp.le.s32.totalorder 1, %s16
      %p119 = scmp.lt.s32.totalorder %s16, 5
      %p120 = pnand %p118, %p119
      %p121 = pneg %p120
      // Predicated region
      $region9: #{tpu_custom_call.1} parent=5 // pred_check
        _
      $region10: #{tpu_custom_call.1} parent=5 // pred_check_branch
        %123 = sbr.rel (%p120) target = $region12
      $region11: #{tpu_custom_call.1} parent=5 // pred_region
        %s124 = ssub.s32 %s16, 1
        // Predicated region
        $region13: #{tpu_custom_call.1} parent=11 // pred_check
          %p125 = pneg %p63
        $region14: #{tpu_custom_call.1} parent=11 // pred_check_branch
          %127 = sbr.rel (%p125) target = $region16
        $region15: #{tpu_custom_call.1} parent=11 // pred_region
          %s129 = ssub.s32 2048, 2048
          %130 = vsyncadd [#allocation6], %s129
          %s131 = sshll.u32 [#allocation5], 4
          %s132 = int_to_ptr.vmem [resolvable:$true] %s131
          %137 = dma.hbm_to_vmem [thread:$0]  %s1, 2048, %s132, [#allocation6], 128, 128, 8
        $region16: #{tpu_custom_call.1} parent=11 // pred_fallthru
          _
        // Predicated region
        $region17: #{tpu_custom_call.1} parent=11 // pred_check
          %p138 = pneg %p84
        $region18: #{tpu_custom_call.1} parent=11 // pred_check_branch
          %140 = sbr.rel (%p138) target = $region20
        $region19: #{tpu_custom_call.1} parent=11 // pred_region
          %s142 = ssub.s32 64, 64
          %143 = vsyncadd [#allocation6], %s142
          %s145 = sshll.u32 [#allocation7], 4
          %s146 = int_to_ptr.vmem [resolvable:$true] %s145
          %148 = dma.hbm_to_vmem [thread:$0]  %s2, 64, %s146, [#allocation6]
        $region20: #{tpu_custom_call.1} parent=11 // pred_fallthru
          _
      $region12: #{tpu_custom_call.1} parent=5 // pred_fallthru
        _
      %p149 = scmp.lt.s32.totalorder %s16, 4
      // Predicated region
      $region21: #{tpu_custom_call.1} parent=5 // pred_check
        %p150 = pneg %p149
      $region22: #{tpu_custom_call.1} parent=5 // pred_check_branch
        %152 = sbr.rel (%p150) target = $region24
      $region23: #{tpu_custom_call.1} parent=5 // pred_region
        // Predicated region
        $region25: #{tpu_custom_call.1} parent=23 // pred_check
          %p153 = pneg %p36
        $region26: #{tpu_custom_call.1} parent=23 // pred_check_branch
          %155 = sbr.rel (%p153) target = $region28
        $region27: #{tpu_custom_call.1} parent=23 // pred_region
          %s156 = sand.u32 %s26, 1
          %s157 = scalar_lea.sflag [#allocation3], %s156
          %s158 = sand.u32 %s26, 1
          %s159 = smul.addr %s158, 104
          %s160 = scalar_lea.vmem [#allocation2], %s159
          %s161 = smul.u32 13, %s16
          %s162 = ssub.s32 50, %s161
          %p163 = scmp.lt.s32.totalorder %s162, 13
          %s164 = scalar_select %p163, %s162, 13
          %s165 = smul.u32 128, %s164
          %s167 = ssub.s32 1664, %s165
          %168 = vsyncadd %s157, %s167
          %p169 = scmp.ne.s32.totalorder 0, %s165
          %s170 = smul.addr %s161, 128
          %s171 = scalar_lea.hbm %s0, %s170
          %s172 = smul.u32 8, %s164
          %s173 = sshll.u32 %s160, 4
          %s174 = int_to_ptr.vmem [resolvable:$true] %s173
          %s175 = sshll.u32 %s172, 4
          %179 = dma.hbm_to_vmem [thread:$0]  (%p169), %s171, %s175, %s174, %s157, 128, 128, 8
        $region28: #{tpu_custom_call.1} parent=23 // pred_fallthru
          _
      $region24: #{tpu_custom_call.1} parent=5 // pred_fallthru
        _
      %p180 = scmp.le.s32.totalorder 1, %s16
      %p181 = scmp.lt.s32.totalorder %s16, 5
      %p182 = pnand %p180, %p181
      %p183 = pneg %p182
      // Predicated region
      $region29: #{tpu_custom_call.1} parent=5 // pred_check
        _
      $region30: #{tpu_custom_call.1} parent=5 // pred_check_branch
        %185 = sbr.rel (%p182) target = $region32
      $region31: #{tpu_custom_call.1} parent=5 // pred_region
        %s186 = ssub.s32 %s16, 1
        %s187 = sand.u32 %s29, 1
        %s188 = scalar_lea.sflag [#allocation3], %s187
        %s189 = sand.u32 %s29, 1
        %s190 = smul.addr %s189, 104
        %s191 = scalar_lea.vmem [#allocation2], %s190
        // Predicated region
        $region33: #{tpu_custom_call.1} parent=31 // pred_check
          %p192 = pneg %p42
        $region34: #{tpu_custom_call.1} parent=31 // pred_check_branch
          %194 = sbr.rel (%p192) target = $region36
        $region35: #{tpu_custom_call.1} parent=31 // pred_region
          %195 = dma.done %s188, 1664
        $region36: #{tpu_custom_call.1} parent=31 // pred_fallthru
          _
        // Predicated region
        $region37: #{tpu_custom_call.1} parent=31 // pred_check
          %p196 = pneg %p63
        $region38: #{tpu_custom_call.1} parent=31 // pred_check_branch
          %198 = sbr.rel (%p196) target = $region40
        $region39: #{tpu_custom_call.1} parent=31 // pred_region
          %199 = dma.done [#allocation6], 2048
        $region40: #{tpu_custom_call.1} parent=31 // pred_fallthru
          _
        // Predicated region
        $region41: #{tpu_custom_call.1} parent=31 // pred_check
          %p200 = pneg %p84
        $region42: #{tpu_custom_call.1} parent=31 // pred_check_branch
          %202 = sbr.rel (%p200) target = $region44
        $region43: #{tpu_custom_call.1} parent=31 // pred_region
          %203 = dma.done [#allocation6], 64
        $region44: #{tpu_custom_call.1} parent=31 // pred_fallthru
          _
        %s204 = sand.u32 %s29, 1
        %s205 = scalar_lea.sflag [#allocation3], %s204
        %s206 = sand.u32 %s29, 1
        %s207 = smul.addr %s206, 104
        %s208 = scalar_lea.vmem [#allocation2], %s207
        %p209 = pneg %p42
        %p210 = pneg %p39
        %p211 = pneg %p63
        %p212 = pneg %p60
        %p213 = pneg %p84
        %p214 = pneg %p81
        %p215 = pneg %p110
        %p216 = pneg %p107
        %s217 = sand.u32 %s97, 1
        %s218 = scalar_lea.sflag [#allocation4], %s217
        %s219 = sand.u32 %s97, 1
        %s220 = smul.addr %s219, 104
        %s221 = scalar_lea.vmem [#allocation8], %s220
        %s222 = smul.u32 13, %s21
        %s223 = ssub.s32 50, %s222
        %p224 = scmp.lt.s32.totalorder %s223, 13
        %s225 = scalar_select %p224, %s223, 13
        %s226 = smul.u32 128, %s225
        %s227 = smul.u32 13, %s21
        %s228 = ssub.s32 50, %s227
        %p229 = scmp.lt.s32.totalorder %s228, 13
        %s230 = scalar_select %p229, %s228, 13
        %s231 = smul.u32 128, %s230
        %v232 = vld [vmem:[%s191] sm:$0xff]
        %v233 = vld [vmem:[%s191 + $0x8] sm:$0xff]
        %v234 = vld [vmem:[%s191 + $0x10] sm:$0xff]
        %v235 = vld [vmem:[%s191 + $0x18] sm:$0xff]
        %v236 = vld [vmem:[%s191 + $0x20] sm:$0xff]
        %v237 = vld [vmem:[%s191 + $0x28] sm:$0xff]
        %v238 = vld [vmem:[%s191 + $0x30] sm:$0xff]
        %v239 = vld [vmem:[%s191 + $0x38] sm:$0xff]
        %v240 = vld [vmem:[%s191 + $0x40] sm:$0xff]
        %v241 = vld [vmem:[%s191 + $0x48] sm:$0xff]
        %v242 = vld [vmem:[%s191 + $0x50] sm:$0xff]
        %v243 = vld [vmem:[%s191 + $0x58] sm:$0xff]
        %v244 = vld [vmem:[%s191 + $0x60] sm:$0xff]
        %v245 = vld [vmem:[#allocation5] sm:$0xff]
        %v246 = vld [vmem:[#allocation5 + $0x8] sm:$0xff]
        %v247 = vld [vmem:[#allocation5 + $0x10] sm:$0xff]
        %v248 = vld [vmem:[#allocation5 + $0x18] sm:$0xff]
        %v249 = vld [vmem:[#allocation5 + $0x20] sm:$0xff]
        %v250 = vld [vmem:[#allocation5 + $0x28] sm:$0xff]
        %v251 = vld [vmem:[#allocation5 + $0x30] sm:$0xff]
        %v252 = vld [vmem:[#allocation5 + $0x38] sm:$0xff]
        %v253 = vld [vmem:[#allocation5 + $0x40] sm:$0xff]
        %v254 = vld [vmem:[#allocation5 + $0x48] sm:$0xff]
        %v255 = vld [vmem:[#allocation5 + $0x50] sm:$0xff]
        %v256 = vld [vmem:[#allocation5 + $0x58] sm:$0xff]
        %v257 = vld [vmem:[#allocation5 + $0x60] sm:$0xff]
        %v258 = vld [vmem:[#allocation5 + $0x68] sm:$0xff]
        %v259 = vld [vmem:[#allocation5 + $0x70] sm:$0xff]
        %v260 = vld [vmem:[#allocation5 + $0x78] sm:$0xff]
        %v261 = vld [vmem:[#allocation7] sm:$0x1]
        %v262 = vlaneseq
        %v263 = vshrl.u32 %v262, 7
        %v264 = vsub.s32 0, %v263
        %v265 = vrot.slane %v261, %v264
        %266 = vmatprep.subr.mxu0 0.0
        %267 = vmatpush1.msra.mxu0 %v260
        %268 = vmatprep.subr.mxu0 0.0
        %269 = vmatpush1.msra.mxu0 %v259
        %270 = vmatprep.subr.mxu0 0.0
        %271 = vmatpush1.msra.mxu0 %v258
        %272 = vmatprep.subr.mxu0 0.0
        %273 = vmatpush1.msra.mxu0 %v257
        %274 = vmatprep.subr.mxu0 0.0
        %275 = vmatpush1.msra.mxu0 %v256
        %276 = vmatprep.subr.mxu0 0.0
        %277 = vmatpush1.msra.mxu0 %v255
        %278 = vmatprep.subr.mxu0 0.0
        %279 = vmatpush1.msra.mxu0 %v254
        %280 = vmatprep.subr.mxu0 0.0
        %281 = vmatpush1.msra.mxu0 %v253
        %282 = vmatprep.subr.mxu0 0.0
        %283 = vmatpush1.msra.mxu0 %v252
        %284 = vmatprep.subr.mxu0 0.0
        %285 = vmatpush1.msra.mxu0 %v251
        %286 = vmatprep.subr.mxu0 0.0
        %287 = vmatpush1.msra.mxu0 %v250
        %288 = vmatprep.subr.mxu0 0.0
        %289 = vmatpush1.msra.mxu0 %v249
        %290 = vmatprep.subr.mxu0 0.0
        %291 = vmatpush1.msra.mxu0 %v248
        %292 = vmatprep.subr.mxu0 0.0
        %293 = vmatpush1.msra.mxu0 %v247
        %294 = vmatprep.subr.mxu0 0.0
        %295 = vmatpush1.msra.mxu0 %v246
        %296 = vmatprep.subr.mxu0 0.0
        %297 = vmatpush1.msra.mxu0 %v245
        %298 = vmatprep.subr.mxu0 0.0
        %299 = vmatpush2.msra.mxu0 0.0
        %300 = vmatprep.subr.mxu0 0.0
        %301 = vmatpush2.msra.mxu0 0.0
        %302 = vmatprep.subr.mxu0 0.0
        %303 = vmatpush2.msra.mxu0 0.0
        %304 = vmatprep.subr.mxu0 0.0
        %305 = vmatpush2.msra.mxu0 0.0
        %306 = vmatprep.subr.mxu0 0.0
        %307 = vmatpush2.msra.mxu0 0.0
        %308 = vmatprep.subr.mxu0 0.0
        %309 = vmatpush2.msra.mxu0 0.0
        %310 = vmatprep.subr.mxu0 0.0
        %311 = vmatpush2.msra.mxu0 0.0
        %312 = vmatprep.subr.mxu0 0.0
        %313 = vmatpush2.msra.mxu0 0.0
        %314 = vmatprep.subr.mxu0 0.0
        %315 = vmatpush2.msra.mxu0 0.0
        %316 = vmatprep.subr.mxu0 0.0
        %317 = vmatpush2.msra.mxu0 0.0
        %318 = vmatprep.subr.mxu0 0.0
        %319 = vmatpush2.msra.mxu0 0.0
        %320 = vmatprep.subr.mxu0 0.0
        %321 = vmatpush2.msra.mxu0 0.0
        %322 = vmatprep.subr.mxu0 0.0
        %323 = vmatpush2.msra.mxu0 0.0
        %324 = vmatprep.subr.mxu0 0.0
        %325 = vmatpush2.msra.mxu0 0.0
        %326 = vmatprep.subr.mxu0 0.0
        %327 = vmatpush2.msra.mxu0 0.0
        %328 = vmatprep.subr.mxu0 0.0
        %329 = vmatpush2.msra.mxu0 0.0
        %330 = vmatprep.mubr.f32.mxu0 0.0
        %331 = vmatmul.mubr.f32.gmra.mxu0 %v232
        %v332 = vpop.f32.mrf.mxu0
        %v333 = vadd.f32 %v265, %v332
        %v334 = vpop.f32.mrf.mxu0
        %335 = vmatprep.mubr.f32.mxu0 0.0
        %336 = vmatmul.mubr.f32.gmra.mxu0 %v233
        %v337 = vpop.f32.mrf.mxu0
        %v338 = vadd.f32 %v265, %v337
        %v339 = vpop.f32.mrf.mxu0
        %340 = vmatprep.mubr.f32.mxu0 0.0
        %341 = vmatmul.mubr.f32.gmra.mxu0 %v234
        %v342 = vpop.f32.mrf.mxu0
        %v343 = vadd.f32 %v265, %v342
        %v344 = vpop.f32.mrf.mxu0
        %345 = vmatprep.mubr.f32.mxu0 0.0
        %346 = vmatmul.mubr.f32.gmra.mxu0 %v235
        %v347 = vpop.f32.mrf.mxu0
        %v348 = vadd.f32 %v265, %v347
        %v349 = vpop.f32.mrf.mxu0
        %350 = vmatprep.mubr.f32.mxu0 0.0
        %351 = vmatmul.mubr.f32.gmra.mxu0 %v236
        %v352 = vpop.f32.mrf.mxu0
        %v353 = vadd.f32 %v265, %v352
        %v354 = vpop.f32.mrf.mxu0
        %355 = vmatprep.mubr.f32.mxu0 0.0
        %356 = vmatmul.mubr.f32.gmra.mxu0 %v237
        %v357 = vpop.f32.mrf.mxu0
        %v358 = vadd.f32 %v265, %v357
        %v359 = vpop.f32.mrf.mxu0
        %360 = vmatprep.mubr.f32.mxu0 0.0
        %361 = vmatmul.mubr.f32.gmra.mxu0 %v238
        %v362 = vpop.f32.mrf.mxu0
        %v363 = vadd.f32 %v265, %v362
        %v364 = vpop.f32.mrf.mxu0
        %365 = vmatprep.mubr.f32.mxu0 0.0
        %366 = vmatmul.mubr.f32.gmra.mxu0 %v239
        %v367 = vpop.f32.mrf.mxu0
        %v368 = vadd.f32 %v265, %v367
        %v369 = vpop.f32.mrf.mxu0
        %370 = vmatprep.mubr.f32.mxu0 0.0
        %371 = vmatmul.mubr.f32.gmra.mxu0 %v240
        %v372 = vpop.f32.mrf.mxu0
        %v373 = vadd.f32 %v265, %v372
        %v374 = vpop.f32.mrf.mxu0
        %375 = vmatprep.mubr.f32.mxu0 0.0
        %376 = vmatmul.mubr.f32.gmra.mxu0 %v241
        %v377 = vpop.f32.mrf.mxu0
        %v378 = vadd.f32 %v265, %v377
        %v379 = vpop.f32.mrf.mxu0
        %380 = vmatprep.mubr.f32.mxu0 0.0
        %381 = vmatmul.mubr.f32.gmra.mxu0 %v242
        %v382 = vpop.f32.mrf.mxu0
        %v383 = vadd.f32 %v265, %v382
        %v384 = vpop.f32.mrf.mxu0
        %385 = vmatprep.mubr.f32.mxu0 0.0
        %386 = vmatmul.mubr.f32.gmra.mxu0 %v243
        %v387 = vpop.f32.mrf.mxu0
        %v388 = vadd.f32 %v265, %v387
        %v389 = vpop.f32.mrf.mxu0
        %390 = vmatprep.mubr.f32.mxu0 0.0
        %391 = vmatmul.mubr.f32.gmra.mxu0 %v244
        %v392 = vpop.f32.mrf.mxu0
        %v393 = vadd.f32 %v265, %v392
        %v394 = vpop.f32.mrf.mxu0
        %395 = vdwg.mxu0
        %v396 = vmax.f32 %v333, 0.0
        %v397 = vmax.f32 %v338, 0.0
        %v398 = vmax.f32 %v343, 0.0
        %v399 = vmax.f32 %v348, 0.0
        %v400 = vmax.f32 %v353, 0.0
        %v401 = vmax.f32 %v358, 0.0
        %v402 = vmax.f32 %v363, 0.0
        %v403 = vmax.f32 %v368, 0.0
        %v404 = vmax.f32 %v373, 0.0
        %v405 = vmax.f32 %v378, 0.0
        %v406 = vmax.f32 %v383, 0.0
        %v407 = vmax.f32 %v388, 0.0
        %v408 = vmax.f32 %v393, 0.0
        %409 = vadd.xlane.f32.xlu0 %v396
        %v410 = vpop.xlane.xlu0 %409
        %411 = vadd.xlane.f32.xlu0 %v397
        %v412 = vpop.xlane.xlu0 %411
        %413 = vadd.xlane.f32.xlu0 %v398
        %v414 = vpop.xlane.xlu0 %413
        %415 = vadd.xlane.f32.xlu0 %v399
        %v416 = vpop.xlane.xlu0 %415
        %417 = vadd.xlane.f32.xlu0 %v400
        %v418 = vpop.xlane.xlu0 %417
        %419 = vadd.xlane.f32.xlu0 %v401
        %v420 = vpop.xlane.xlu0 %419
        %421 = vadd.xlane.f32.xlu0 %v402
        %v422 = vpop.xlane.xlu0 %421
        %423 = vadd.xlane.f32.xlu0 %v403
        %v424 = vpop.xlane.xlu0 %423
        %425 = vadd.xlane.f32.xlu0 %v404
        %v426 = vpop.xlane.xlu0 %425
        %427 = vadd.xlane.f32.xlu0 %v405
        %v428 = vpop.xlane.xlu0 %427
        %429 = vadd.xlane.f32.xlu0 %v406
        %v430 = vpop.xlane.xlu0 %429
        %431 = vadd.xlane.f32.xlu0 %v407
        %v432 = vpop.xlane.xlu0 %431
        %433 = vadd.xlane.f32.xlu0 %v408
        %v434 = vpop.xlane.xlu0 %433
        %v435 = vmul.f32 %v410, 0.0078125
        %v436 = vmul.f32 %v412, 0.0078125
        %v437 = vmul.f32 %v414, 0.0078125
        %v438 = vmul.f32 %v416, 0.0078125
        %v439 = vmul.f32 %v418, 0.0078125
        %v440 = vmul.f32 %v420, 0.0078125
        %v441 = vmul.f32 %v422, 0.0078125
        %v442 = vmul.f32 %v424, 0.0078125
        %v443 = vmul.f32 %v426, 0.0078125
        %v444 = vmul.f32 %v428, 0.0078125
        %v445 = vmul.f32 %v430, 0.0078125
        %v446 = vmul.f32 %v432, 0.0078125
        %v447 = vmul.f32 %v434, 0.0078125
        %v448 = vsub.f32 %v396, %v435
        %v449 = vsub.f32 %v397, %v436
        %v450 = vsub.f32 %v398, %v437
        %v451 = vsub.f32 %v399, %v438
        %v452 = vsub.f32 %v400, %v439
        %v453 = vsub.f32 %v401, %v440
        %v454 = vsub.f32 %v402, %v441
        %v455 = vsub.f32 %v403, %v442
        %v456 = vsub.f32 %v404, %v443
        %v457 = vsub.f32 %v405, %v444
        %v458 = vsub.f32 %v406, %v445
        %v459 = vsub.f32 %v407, %v446
        %v460 = vsub.f32 %v408, %v447
        %v461 = vmul.f32 %v448, %v448
        %v462 = vmul.f32 %v449, %v449
        %v463 = vmul.f32 %v450, %v450
        %v464 = vmul.f32 %v451, %v451
        %v465 = vmul.f32 %v452, %v452
        %v466 = vmul.f32 %v453, %v453
        %v467 = vmul.f32 %v454, %v454
        %v468 = vmul.f32 %v455, %v455
        %v469 = vmul.f32 %v456, %v456
        %v470 = vmul.f32 %v457, %v457
        %v471 = vmul.f32 %v458, %v458
        %v472 = vmul.f32 %v459, %v459
        %v473 = vmul.f32 %v460, %v460
        %474 = vadd.xlane.f32.xlu0 %v461
        %v475 = vpop.xlane.xlu0 %474
        %476 = vadd.xlane.f32.xlu0 %v462
        %v477 = vpop.xlane.xlu0 %476
        %478 = vadd.xlane.f32.xlu0 %v463
        %v479 = vpop.xlane.xlu0 %478
        %480 = vadd.xlane.f32.xlu0 %v464
        %v481 = vpop.xlane.xlu0 %480
        %482 = vadd.xlane.f32.xlu0 %v465
        %v483 = vpop.xlane.xlu0 %482
        %484 = vadd.xlane.f32.xlu0 %v466
        %v485 = vpop.xlane.xlu0 %484
        %486 = vadd.xlane.f32.xlu0 %v467
        %v487 = vpop.xlane.xlu0 %486
        %488 = vadd.xlane.f32.xlu0 %v468
        %v489 = vpop.xlane.xlu0 %488
        %490 = vadd.xlane.f32.xlu0 %v469
        %v491 = vpop.xlane.xlu0 %490
        %492 = vadd.xlane.f32.xlu0 %v470
        %v493 = vpop.xlane.xlu0 %492
        %494 = vadd.xlane.f32.xlu0 %v471
        %v495 = vpop.xlane.xlu0 %494
        %496 = vadd.xlane.f32.xlu0 %v472
        %v497 = vpop.xlane.xlu0 %496
        %498 = vadd.xlane.f32.xlu0 %v473
        %v499 = vpop.xlane.xlu0 %498
        %v500 = vmul.f32 %v475, 0.0078125
        %v501 = vmul.f32 %v477, 0.0078125
        %v502 = vmul.f32 %v479, 0.0078125
        %v503 = vmul.f32 %v481, 0.0078125
        %v504 = vmul.f32 %v483, 0.0078125
        %v505 = vmul.f32 %v485, 0.0078125
        %v506 = vmul.f32 %v487, 0.0078125
        %v507 = vmul.f32 %v489, 0.0078125
        %v508 = vmul.f32 %v491, 0.0078125
        %v509 = vmul.f32 %v493, 0.0078125
        %v510 = vmul.f32 %v495, 0.0078125
        %v511 = vmul.f32 %v497, 0.0078125
        %v512 = vmul.f32 %v499, 0.0078125
        %v513 = vadd.f32 %v500, 1e-05
        %v514 = vadd.f32 %v501, 1e-05
        %v515 = vadd.f32 %v502, 1e-05
        %v516 = vadd.f32 %v503, 1e-05
        %v517 = vadd.f32 %v504, 1e-05
        %v518 = vadd.f32 %v505, 1e-05
        %v519 = vadd.f32 %v506, 1e-05
        %v520 = vadd.f32 %v507, 1e-05
        %v521 = vadd.f32 %v508, 1e-05
        %v522 = vadd.f32 %v509, 1e-05
        %v523 = vadd.f32 %v510, 1e-05
        %v524 = vadd.f32 %v511, 1e-05
        %v525 = vadd.f32 %v512, 1e-05
        %v526 = vrsqrt.pop %v513
        %v527 = vrsqrt.pop %v514
        %v528 = vrsqrt.pop %v515
        %v529 = vrsqrt.pop %v516
        %v530 = vrsqrt.pop %v517
        %v531 = vrsqrt.pop %v518
        %v532 = vrsqrt.pop %v519
        %v533 = vrsqrt.pop %v520
        %v534 = vrsqrt.pop %v521
        %v535 = vrsqrt.pop %v522
        %v536 = vrsqrt.pop %v523
        %v537 = vrsqrt.pop %v524
        %v538 = vrsqrt.pop %v525
        %v539 = vld [vmem:[#allocation7 + $0x1] sm:$0x1]
        %v540 = vld [vmem:[#allocation7 + $0x2] sm:$0x1]
        %v541 = vmul.f32 %v448, %v526
        %v542 = vmul.f32 %v449, %v527
        %v543 = vmul.f32 %v450, %v528
        %v544 = vmul.f32 %v451, %v529
        %v545 = vmul.f32 %v452, %v530
        %v546 = vmul.f32 %v453, %v531
        %v547 = vmul.f32 %v454, %v532
        %v548 = vmul.f32 %v455, %v533
        %v549 = vmul.f32 %v456, %v534
        %v550 = vmul.f32 %v457, %v535
        %v551 = vmul.f32 %v458, %v536
        %v552 = vmul.f32 %v459, %v537
        %v553 = vmul.f32 %v460, %v538
        %v554 = vlaneseq
        %v555 = vshrl.u32 %v554, 7
        %v556 = vsub.s32 0, %v555
        %v557 = vrot.slane %v539, %v556
        %v558 = vmul.f32 %v541, %v557
        %v559 = vmul.f32 %v542, %v557
        %v560 = vmul.f32 %v543, %v557
        %v561 = vmul.f32 %v544, %v557
        %v562 = vmul.f32 %v545, %v557
        %v563 = vmul.f32 %v546, %v557
        %v564 = vmul.f32 %v547, %v557
        %v565 = vmul.f32 %v548, %v557
        %v566 = vmul.f32 %v549, %v557
        %v567 = vmul.f32 %v550, %v557
        %v568 = vmul.f32 %v551, %v557
        %v569 = vmul.f32 %v552, %v557
        %v570 = vmul.f32 %v553, %v557
        %v571 = vlaneseq
        %v572 = vshrl.u32 %v571, 7
        %v573 = vsub.s32 0, %v572
        %v574 = vrot.slane %v540, %v573
        %v575 = vadd.f32 %v558, %v574
        %v576 = vadd.f32 %v559, %v574
        %v577 = vadd.f32 %v560, %v574
        %v578 = vadd.f32 %v561, %v574
        %v579 = vadd.f32 %v562, %v574
        %v580 = vadd.f32 %v563, %v574
        %v581 = vadd.f32 %v564, %v574
        %v582 = vadd.f32 %v565, %v574
        %v583 = vadd.f32 %v566, %v574
        %v584 = vadd.f32 %v567, %v574
        %v585 = vadd.f32 %v568, %v574
        %v586 = vadd.f32 %v569, %v574
        %v587 = vadd.f32 %v570, %v574
        %588 = vst [vmem:[%s221] sm:$0xff] %v575
        %589 = vst [vmem:[%s221 + $0x8] sm:$0xff] %v576
        %590 = vst [vmem:[%s221 + $0x10] sm:$0xff] %v577
        %591 = vst [vmem:[%s221 + $0x18] sm:$0xff] %v578
        %592 = vst [vmem:[%s221 + $0x20] sm:$0xff] %v579
        %593 = vst [vmem:[%s221 + $0x28] sm:$0xff] %v580
        %594 = vst [vmem:[%s221 + $0x30] sm:$0xff] %v581
        %595 = vst [vmem:[%s221 + $0x38] sm:$0xff] %v582
        %596 = vst [vmem:[%s221 + $0x40] sm:$0xff] %v583
        %597 = vst [vmem:[%s221 + $0x48] sm:$0xff] %v584
        %598 = vst [vmem:[%s221 + $0x50] sm:$0xff] %v585
        %599 = vst [vmem:[%s221 + $0x58] sm:$0xff] %v586
        %600 = vst [vmem:[%s221 + $0x60] sm:$0xff] %v587
        %s601 = sand.u32 %s97, 1
        %s602 = scalar_lea.sflag [#allocation4], %s601
        %s603 = sand.u32 %s97, 1
        %s604 = smul.addr %s603, 104
        %s605 = scalar_lea.vmem [#allocation8], %s604
        // Predicated region
        $region45: #{tpu_custom_call.1} parent=31 // pred_check
          %p606 = pneg %p107
        $region46: #{tpu_custom_call.1} parent=31 // pred_check_branch
          %608 = sbr.rel (%p606) target = $region48
        $region47: #{tpu_custom_call.1} parent=31 // pred_region
          %s609 = smul.u32 13, %s21
          %s610 = ssub.s32 50, %s609
          %p611 = scmp.lt.s32.totalorder %s610, 13
          %s612 = scalar_select %p611, %s610, 13
          %s613 = smul.u32 128, %s612
          %s615 = ssub.s32 1664, %s613
          %616 = vsyncadd %s602, %s615
          %p617 = scmp.ne.s32.totalorder 0, %s613
          %s618 = smul.addr %s609, 128
          %s619 = scalar_lea.hbm %s3, %s618
          %s620 = smul.u32 8, %s612
          %s621 = sshll.u32 %s605, 4
          %s622 = int_to_ptr.vmem [resolvable:$true] %s621
          %s623 = sshll.u32 %s620, 4
          %627 = dma.vmem_to_hbm [thread:$0]  (%p617), %s622, %s623, %s619, %s602, 128, 128, 8
        $region48: #{tpu_custom_call.1} parent=31 // pred_fallthru
          _
      $region32: #{tpu_custom_call.1} parent=5 // pred_fallthru
        _
      %p628 = scmp.le.s32.totalorder 2, %s16
      // Predicated region
      $region49: #{tpu_custom_call.1} parent=5 // pred_check
        %p629 = pneg %p628
      $region50: #{tpu_custom_call.1} parent=5 // pred_check_branch
        %631 = sbr.rel (%p629) target = $region52
      $region51: #{tpu_custom_call.1} parent=5 // pred_region
        %s632 = ssub.s32 %s16, 2
        // Predicated region
        $region53: #{tpu_custom_call.1} parent=51 // pred_check
          %p633 = pneg %p113
        $region54: #{tpu_custom_call.1} parent=51 // pred_check_branch
          %635 = sbr.rel (%p633) target = $region56
        $region55: #{tpu_custom_call.1} parent=51 // pred_region
          %s636 = sand.u32 %s98, 1
          %s637 = scalar_lea.sflag [#allocation4], %s636
          %s638 = sand.u32 %s98, 1
          %s639 = smul.addr %s638, 104
          %s640 = scalar_lea.vmem [#allocation8], %s639
          %641 = dma.done %s637, 1664
        $region56: #{tpu_custom_call.1} parent=51 // pred_fallthru
          _
      $region52: #{tpu_custom_call.1} parent=5 // pred_fallthru
        _
    $region6: #{tpu_custom_call.1} parent=1 // loop_footer
      %s20 = sadd.s32 1, %s16
    $region7: #{tpu_custom_call.1} parent=1 // loop_footer_branch
      %15 = sbr.rel target = $region3
    $region8: #{tpu_custom_call.1} parent=1 // loop_exit
      _
    %642 = vsyncpa [#allocation3], 1
    %s643 = scalar_lea.sflag [#allocation3], 1
    %644 = vsyncpa %s643, 1
    %645 = vsyncpa [#allocation6], 1
    %646 = vsyncpa [#allocation4], 1
    %s647 = scalar_lea.sflag [#allocation4], 1
    %648 = vsyncpa %s647, 1

// kernel: tpu_custom_call.1
$region0: #{tpu_custom_call.1}
  #allocation0 [shape = 'u32[]', space=smem, size = 0x4, offset = 0x4, fixed_abs, tag = 'smem constant byte address 0x4 - core index']
  #allocation1 [shape = 'u32[144,128]{1,0:T(1,128)}', space=vmem, size = 0x12000, scoped, tag = 'internal scratch']
  %s0 = inlined_call_operand.hbm [shape: f32[400,128], index: 0, kind: input, shape index: {}]
  %s1 = inlined_call_operand.hbm [shape: f32[128,128], index: 1, kind: input, shape index: {}]
  %s2 = inlined_call_operand.hbm [shape: f32[3,128], index: 2, kind: input, shape index: {}]
  %s3 = inlined_call_operand.hbm [shape: f32[400,128], index: 3, kind: output, shape index: {}]
  %s4 = sld [smem:[#allocation0]]
  $region57: #{tpu_custom_call.1} parent=0
    _
  %s6 = ssub.s32 1, %s4
  %s7 = scalar_select 0, %s6, %s4
  $region1: #{tpu_custom_call.1} parent=0
    #allocation2 [shape = 'u8[106496]{0}', space=vmem, size = 0x1a000, scoped, tag = 'input window, operand 0']
    #allocation3 [shape = 's32[2]{0}', space=sflag, size = 0x8, scoped, tag = 'scoped memory for tpu_custom_call.1']
    #allocation4 [shape = 's32[2]{0}', space=sflag, size = 0x8, scoped, tag = 'scoped memory for tpu_custom_call.1']
    #allocation5 [shape = 'u8[65536]{0}', space=vmem, size = 0x10000, scoped, tag = 'input window, operand 1, single buffered']
    #allocation6 [shape = 's32[1]{0}', space=sflag, size = 0x4, scoped, tag = 'scoped memory for tpu_custom_call.1']
    #allocation7 [shape = 'u8[2048]{0}', space=vmem, size = 0x800, scoped, tag = 'input window, operand 2, single buffered']
    #allocation8 [shape = 'u8[106496]{0}', space=vmem, size = 0x1a000, scoped, tag = 'output window, operand 0']
    %8 = vsyncpa [#allocation3], 0
    %s9 = scalar_lea.sflag [#allocation3], 1
    %10 = vsyncpa %s9, 0
    %11 = vsyncpa [#allocation6], 0
    %12 = vsyncpa [#allocation4], 0
    %s13 = scalar_lea.sflag [#allocation4], 1
    %14 = vsyncpa %s13, 0
    loop: start=0, step=1, limit=6
    $region2: #{tpu_custom_call.1} parent=1 // loop_pre_header
      _
    $region3: #{tpu_custom_call.1} parent=1 // loop_header
      %s16 = sphi 0, %s20
      %p17 = scmp.ge.s32.totalorder %s16, 6
      %s26 = sphi 0, %s28
      %s29 = sphi 0, %s26
      %s30 = sphi 0, %s29
      %s46 = sphi 0, %s30
      %s50 = sphi 0, %s50
      %s52 = sphi 0, %s50
      %s53 = sphi 0, %s52
      %s67 = sphi 0, %s53
      %s71 = sphi 0, %s71
      %s73 = sphi 0, %s71
      %s74 = sphi 0, %s73
      %s88 = sphi 0, %s74
      %s94 = sphi 0, %s96
      %s97 = sphi 0, %s94
      %s98 = sphi 0, %s97
      %s114 = sphi 0, %s98
    $region4: #{tpu_custom_call.1} parent=1 // loop_header_branch
      %19 = sbr.rel (%p17) target = $region8
    $region5: #{tpu_custom_call.1} parent=1 // loop_body
      %s21 = ssub.s32 %s16, 1
      %s22 = ssub.s32 %s16, 2
      %s23 = sadd.s32 %s16, 1
      %s24 = ssub.s32 %s16, %s23
      %p25 = scmp.eq.s32.totalorder %s24, 0
      %s27 = sadd.s32 %s26, 1
      %s28 = scalar_select %p25, %s26, %s27
      %p31 = pneg %p25
      %p32 = scmp.eq.s32.totalorder %s16, 3
      %p33 = por %p31, %p32
      %p34 = scmp.ne.s32.totalorder %s26, %s29
      %p35 = scmp.eq.s32.totalorder %s16, 0
      %p36 = por %p34, %p35
      %p37 = scmp.ne.s32.totalorder %s26, %s29
      %p38 = scmp.eq.s32.totalorder %s21, 3
      %p39 = por %p37, %p38
      %p40 = scmp.ne.s32.totalorder %s29, %s30
      %p41 = scmp.eq.s32.totalorder %s21, 0
      %p42 = por %p40, %p41
      %p43 = scmp.ne.s32.totalorder %s29, %s30
      %p44 = scmp.eq.s32.totalorder %s22, 3
      %p45 = por %p43, %p44
      %p47 = scmp.ne.s32.totalorder %s30, %s46
      %p48 = scmp.eq.s32.totalorder %s22, 0
      %p49 = por %p47, %p48
      %s51 = sadd.s32 %s50, 1
      %p54 = scmp.eq.s32.totalorder %s16, 3
      %p55 = scmp.ne.s32.totalorder %s50, %s52
      %p56 = scmp.eq.s32.totalorder %s16, 0
      %p57 = por %p55, %p56
      %p58 = scmp.ne.s32.totalorder %s50, %s52
      %p59 = scmp.eq.s32.totalorder %s21, 3
      %p60 = por %p58, %p59
      %p61 = scmp.ne.s32.totalorder %s52, %s53
      %p62 = scmp.eq.s32.totalorder %s21, 0
      %p63 = por %p61, %p62
      %p64 = scmp.ne.s32.totalorder %s52, %s53
      %p65 = scmp.eq.s32.totalorder %s22, 3
      %p66 = por %p64, %p65
      %p68 = scmp.ne.s32.totalorder %s53, %s67
      %p69 = scmp.eq.s32.totalorder %s22, 0
      %p70 = por %p68, %p69
      %s72 = sadd.s32 %s71, 1
      %p75 = scmp.eq.s32.totalorder %s16, 3
      %p76 = scmp.ne.s32.totalorder %s71, %s73
      %p77 = scmp.eq.s32.totalorder %s16, 0
      %p78 = por %p76, %p77
      %p79 = scmp.ne.s32.totalorder %s71, %s73
      %p80 = scmp.eq.s32.totalorder %s21, 3
      %p81 = por %p79, %p80
      %p82 = scmp.ne.s32.totalorder %s73, %s74
      %p83 = scmp.eq.s32.totalorder %s21, 0
      %p84 = por %p82, %p83
      %p85 = scmp.ne.s32.totalorder %s73, %s74
      %p86 = scmp.eq.s32.totalorder %s22, 3
      %p87 = por %p85, %p86
      %p89 = scmp.ne.s32.totalorder %s74, %s88
      %p90 = scmp.eq.s32.totalorder %s22, 0
      %p91 = por %p89, %p90
      %s92 = ssub.s32 %s16, %s23
      %p93 = scmp.eq.s32.totalorder %s92, 0
      %s95 = sadd.s32 %s94, 1
      %s96 = scalar_select %p93, %s94, %s95
      %p99 = pneg %p93
      %p100 = scmp.eq.s32.totalorder %s16, 3
      %p101 = por %p99, %p100
      %p102 = scmp.ne.s32.totalorder %s94, %s97
      %p103 = scmp.eq.s32.totalorder %s16, 0
      %p104 = por %p102, %p103
      %p105 = scmp.ne.s32.totalorder %s94, %s97
      %p106 = scmp.eq.s32.totalorder %s21, 3
      %p107 = por %p105, %p106
      %p108 = scmp.ne.s32.totalorder %s97, %s98
      %p109 = scmp.eq.s32.totalorder %s21, 0
      %p110 = por %p108, %p109
      %p111 = scmp.ne.s32.totalorder %s97, %s98
      %p112 = scmp.eq.s32.totalorder %s22, 3
      %p113 = por %p111, %p112
      %p115 = scmp.ne.s32.totalorder %s98, %s114
      %p116 = scmp.eq.s32.totalorder %s22, 0
      %p117 = por %p115, %p116
      %p118 = scmp.le.s32.totalorder 1, %s16
      %p119 = scmp.lt.s32.totalorder %s16, 5
      %p120 = pnand %p118, %p119
      %p121 = pneg %p120
      // Predicated region
      $region9: #{tpu_custom_call.1} parent=5 // pred_check
        _
      $region10: #{tpu_custom_call.1} parent=5 // pred_check_branch
        %123 = sbr.rel (%p120) target = $region12
      $region11: #{tpu_custom_call.1} parent=5 // pred_region
        %s124 = ssub.s32 %s16, 1
        // Predicated region
        $region13: #{tpu_custom_call.1} parent=11 // pred_check
          %p125 = pneg %p63
        $region14: #{tpu_custom_call.1} parent=11 // pred_check_branch
          %127 = sbr.rel (%p125) target = $region16
        $region15: #{tpu_custom_call.1} parent=11 // pred_region
          %s129 = ssub.s32 2048, 2048
          %130 = vsyncadd [#allocation6], %s129
          %s131 = sshll.u32 [#allocation5], 4
          %s132 = int_to_ptr.vmem [resolvable:$true] %s131
          %137 = dma.hbm_to_vmem [thread:$0]  %s1, 2048, %s132, [#allocation6], 128, 128, 8
        $region16: #{tpu_custom_call.1} parent=11 // pred_fallthru
          _
        // Predicated region
        $region17: #{tpu_custom_call.1} parent=11 // pred_check
          %p138 = pneg %p84
        $region18: #{tpu_custom_call.1} parent=11 // pred_check_branch
          %140 = sbr.rel (%p138) target = $region20
        $region19: #{tpu_custom_call.1} parent=11 // pred_region
          %s142 = ssub.s32 64, 64
          %143 = vsyncadd [#allocation6], %s142
          %s145 = sshll.u32 [#allocation7], 4
          %s146 = int_to_ptr.vmem [resolvable:$true] %s145
          %148 = dma.hbm_to_vmem [thread:$0]  %s2, 64, %s146, [#allocation6]
        $region20: #{tpu_custom_call.1} parent=11 // pred_fallthru
          _
      $region12: #{tpu_custom_call.1} parent=5 // pred_fallthru
        _
      %p149 = scmp.lt.s32.totalorder %s16, 4
      // Predicated region
      $region21: #{tpu_custom_call.1} parent=5 // pred_check
        %p150 = pneg %p149
      $region22: #{tpu_custom_call.1} parent=5 // pred_check_branch
        %152 = sbr.rel (%p150) target = $region24
      $region23: #{tpu_custom_call.1} parent=5 // pred_region
        // Predicated region
        $region25: #{tpu_custom_call.1} parent=23 // pred_check
          %p153 = pneg %p36
        $region26: #{tpu_custom_call.1} parent=23 // pred_check_branch
          %155 = sbr.rel (%p153) target = $region28
        $region27: #{tpu_custom_call.1} parent=23 // pred_region
          %s156 = sand.u32 %s26, 1
          %s157 = scalar_lea.sflag [#allocation3], %s156
          %s158 = sand.u32 %s26, 1
          %s159 = smul.addr %s158, 104
          %s160 = scalar_lea.vmem [#allocation2], %s159
          %s161 = smul.u32 13, %s16
          %s162 = ssub.s32 50, %s161
          %p163 = scmp.lt.s32.totalorder %s162, 13
          %s164 = scalar_select %p163, %s162, 13
          %s165 = smul.u32 128, %s164
          %s167 = ssub.s32 1664, %s165
          %168 = vsyncadd %s157, %s167
          %p169 = scmp.ne.s32.totalorder 0, %s165
          %s170 = smul.addr %s161, 128
          %s171 = scalar_lea.hbm %s0, %s170
          %s172 = smul.u32 8, %s164
          %s173 = sshll.u32 %s160, 4
          %s174 = int_to_ptr.vmem [resolvable:$true] %s173
          %s175 = sshll.u32 %s172, 4
          %179 = dma.hbm_to_vmem [thread:$0]  (%p169), %s171, %s175, %s174, %s157, 128, 128, 8
        $region28: #{tpu_custom_call.1} parent=23 // pred_fallthru
          _
      $region24: #{tpu_custom_call.1} parent=5 // pred_fallthru
        _
      %p180 = scmp.le.s32.totalorder 1, %s16
      %p181 = scmp.lt.s32.totalorder %s16, 5
      %p182 = pnand %p180, %p181
      %p183 = pneg %p182
      // Predicated region
      $region29: #{tpu_custom_call.1} parent=5 // pred_check
        _
      $region30: #{tpu_custom_call.1} parent=5 // pred_check_branch
        %185 = sbr.rel (%p182) target = $region32
      $region31: #{tpu_custom_call.1} parent=5 // pred_region
        %s186 = ssub.s32 %s16, 1
        %s187 = sand.u32 %s29, 1
        %s188 = scalar_lea.sflag [#allocation3], %s187
        %s189 = sand.u32 %s29, 1
        %s190 = smul.addr %s189, 104
        %s191 = scalar_lea.vmem [#allocation2], %s190
        // Predicated region
        $region33: #{tpu_custom_call.1} parent=31 // pred_check
          %p192 = pneg %p42
        $region34: #{tpu_custom_call.1} parent=31 // pred_check_branch
          %194 = sbr.rel (%p192) target = $region36
        $region35: #{tpu_custom_call.1} parent=31 // pred_region
          %195 = dma.done %s188, 1664
        $region36: #{tpu_custom_call.1} parent=31 // pred_fallthru
          _
        // Predicated region
        $region37: #{tpu_custom_call.1} parent=31 // pred_check
          %p196 = pneg %p63
        $region38: #{tpu_custom_call.1} parent=31 // pred_check_branch
          %198 = sbr.rel (%p196) target = $region40
        $region39: #{tpu_custom_call.1} parent=31 // pred_region
          %199 = dma.done [#allocation6], 2048
        $region40: #{tpu_custom_call.1} parent=31 // pred_fallthru
          _
        // Predicated region
        $region41: #{tpu_custom_call.1} parent=31 // pred_check
          %p200 = pneg %p84
        $region42: #{tpu_custom_call.1} parent=31 // pred_check_branch
          %202 = sbr.rel (%p200) target = $region44
        $region43: #{tpu_custom_call.1} parent=31 // pred_region
          %203 = dma.done [#allocation6], 64
        $region44: #{tpu_custom_call.1} parent=31 // pred_fallthru
          _
        %s204 = sand.u32 %s29, 1
        %s205 = scalar_lea.sflag [#allocation3], %s204
        %s206 = sand.u32 %s29, 1
        %s207 = smul.addr %s206, 104
        %s208 = scalar_lea.vmem [#allocation2], %s207
        %p209 = pneg %p42
        %p210 = pneg %p39
        %p211 = pneg %p63
        %p212 = pneg %p60
        %p213 = pneg %p84
        %p214 = pneg %p81
        %p215 = pneg %p110
        %p216 = pneg %p107
        %s217 = sand.u32 %s97, 1
        %s218 = scalar_lea.sflag [#allocation4], %s217
        %s219 = sand.u32 %s97, 1
        %s220 = smul.addr %s219, 104
        %s221 = scalar_lea.vmem [#allocation8], %s220
        %s222 = smul.u32 13, %s21
        %s223 = ssub.s32 50, %s222
        %p224 = scmp.lt.s32.totalorder %s223, 13
        %s225 = scalar_select %p224, %s223, 13
        %s226 = smul.u32 128, %s225
        %s227 = smul.u32 13, %s21
        %s228 = ssub.s32 50, %s227
        %p229 = scmp.lt.s32.totalorder %s228, 13
        %s230 = scalar_select %p229, %s228, 13
        %s231 = smul.u32 128, %s230
        %v232 = vld [vmem:[%s191] sm:$0xff]
        %v233 = vld [vmem:[%s191 + $0x8] sm:$0xff]
        %v234 = vld [vmem:[%s191 + $0x10] sm:$0xff]
        %v235 = vld [vmem:[%s191 + $0x18] sm:$0xff]
        %v236 = vld [vmem:[%s191 + $0x20] sm:$0xff]
        %v237 = vld [vmem:[%s191 + $0x28] sm:$0xff]
        %v238 = vld [vmem:[%s191 + $0x30] sm:$0xff]
        %v239 = vld [vmem:[%s191 + $0x38] sm:$0xff]
        %v240 = vld [vmem:[%s191 + $0x40] sm:$0xff]
        %v241 = vld [vmem:[%s191 + $0x48] sm:$0xff]
        %v242 = vld [vmem:[%s191 + $0x50] sm:$0xff]
        %v243 = vld [vmem:[%s191 + $0x58] sm:$0xff]
        %v244 = vld [vmem:[%s191 + $0x60] sm:$0xff]
        %v245 = vld [vmem:[#allocation5] sm:$0xff]
        %v246 = vld [vmem:[#allocation5 + $0x8] sm:$0xff]
        %v247 = vld [vmem:[#allocation5 + $0x10] sm:$0xff]
        %v248 = vld [vmem:[#allocation5 + $0x18] sm:$0xff]
        %v249 = vld [vmem:[#allocation5 + $0x20] sm:$0xff]
        %v250 = vld [vmem:[#allocation5 + $0x28] sm:$0xff]
        %v251 = vld [vmem:[#allocation5 + $0x30] sm:$0xff]
        %v252 = vld [vmem:[#allocation5 + $0x38] sm:$0xff]
        %v253 = vld [vmem:[#allocation5 + $0x40] sm:$0xff]
        %v254 = vld [vmem:[#allocation5 + $0x48] sm:$0xff]
        %v255 = vld [vmem:[#allocation5 + $0x50] sm:$0xff]
        %v256 = vld [vmem:[#allocation5 + $0x58] sm:$0xff]
        %v257 = vld [vmem:[#allocation5 + $0x60] sm:$0xff]
        %v258 = vld [vmem:[#allocation5 + $0x68] sm:$0xff]
        %v259 = vld [vmem:[#allocation5 + $0x70] sm:$0xff]
        %v260 = vld [vmem:[#allocation5 + $0x78] sm:$0xff]
        %v261 = vld [vmem:[#allocation7] sm:$0x1]
        %v262 = vlaneseq
        %v263 = vshrl.u32 %v262, 7
        %v264 = vsub.s32 0, %v263
        %v265 = vrot.slane %v261, %v264
        %266 = vmatprep.subr.mxu0 0.0
        %267 = vmatpush1.msra.mxu0 %v260
        %268 = vmatprep.subr.mxu0 0.0
        %269 = vmatpush1.msra.mxu0 %v259
        %270 = vmatprep.subr.mxu0 0.0
        %271 = vmatpush1.msra.mxu0 %v258
        %272 = vmatprep.subr.mxu0 0.0
        %273 = vmatpush1.msra.mxu0 %v257
        %274 = vmatprep.subr.mxu0 0.0
        %275 = vmatpush1.msra.mxu0 %v256
        %276 = vmatprep.subr.mxu0 0.0
        %277 = vmatpush1.msra.mxu0 %v255
        %278 = vmatprep.subr.mxu0 0.0
        %279 = vmatpush1.msra.mxu0 %v254
        %280 = vmatprep.subr.mxu0 0.0
        %281 = vmatpush1.msra.mxu0 %v253
        %282 = vmatprep.subr.mxu0 0.0
        %283 = vmatpush1.msra.mxu0 %v252
        %284 = vmatprep.subr.mxu0 0.0
        %285 = vmatpush1.msra.mxu0 %v251
        %286 = vmatprep.subr.mxu0 0.0
        %287 = vmatpush1.msra.mxu0 %v250
        %288 = vmatprep.subr.mxu0 0.0
        %289 = vmatpush1.msra.mxu0 %v249
        %290 = vmatprep.subr.mxu0 0.0
        %291 = vmatpush1.msra.mxu0 %v248
        %292 = vmatprep.subr.mxu0 0.0
        %293 = vmatpush1.msra.mxu0 %v247
        %294 = vmatprep.subr.mxu0 0.0
        %295 = vmatpush1.msra.mxu0 %v246
        %296 = vmatprep.subr.mxu0 0.0
        %297 = vmatpush1.msra.mxu0 %v245
        %298 = vmatprep.subr.mxu0 0.0
        %299 = vmatpush2.msra.mxu0 0.0
        %300 = vmatprep.subr.mxu0 0.0
        %301 = vmatpush2.msra.mxu0 0.0
        %302 = vmatprep.subr.mxu0 0.0
        %303 = vmatpush2.msra.mxu0 0.0
        %304 = vmatprep.subr.mxu0 0.0
        %305 = vmatpush2.msra.mxu0 0.0
        %306 = vmatprep.subr.mxu0 0.0
        %307 = vmatpush2.msra.mxu0 0.0
        %308 = vmatprep.subr.mxu0 0.0
        %309 = vmatpush2.msra.mxu0 0.0
        %310 = vmatprep.subr.mxu0 0.0
        %311 = vmatpush2.msra.mxu0 0.0
        %312 = vmatprep.subr.mxu0 0.0
        %313 = vmatpush2.msra.mxu0 0.0
        %314 = vmatprep.subr.mxu0 0.0
        %315 = vmatpush2.msra.mxu0 0.0
        %316 = vmatprep.subr.mxu0 0.0
        %317 = vmatpush2.msra.mxu0 0.0
        %318 = vmatprep.subr.mxu0 0.0
        %319 = vmatpush2.msra.mxu0 0.0
        %320 = vmatprep.subr.mxu0 0.0
        %321 = vmatpush2.msra.mxu0 0.0
        %322 = vmatprep.subr.mxu0 0.0
        %323 = vmatpush2.msra.mxu0 0.0
        %324 = vmatprep.subr.mxu0 0.0
        %325 = vmatpush2.msra.mxu0 0.0
        %326 = vmatprep.subr.mxu0 0.0
        %327 = vmatpush2.msra.mxu0 0.0
        %328 = vmatprep.subr.mxu0 0.0
        %329 = vmatpush2.msra.mxu0 0.0
        %330 = vmatprep.mubr.f32.mxu0 0.0
        %331 = vmatmul.mubr.f32.gmra.mxu0 %v232
        %v332 = vpop.f32.mrf.mxu0
        %v333 = vadd.f32 %v265, %v332
        %v334 = vpop.f32.mrf.mxu0
        %335 = vmatprep.mubr.f32.mxu0 0.0
        %336 = vmatmul.mubr.f32.gmra.mxu0 %v233
        %v337 = vpop.f32.mrf.mxu0
        %v338 = vadd.f32 %v265, %v337
        %v339 = vpop.f32.mrf.mxu0
        %340 = vmatprep.mubr.f32.mxu0 0.0
        %341 = vmatmul.mubr.f32.gmra.mxu0 %v234
        %v342 = vpop.f32.mrf.mxu0
        %v343 = vadd.f32 %v265, %v342
        %v344 = vpop.f32.mrf.mxu0
        %345 = vmatprep.mubr.f32.mxu0 0.0
        %346 = vmatmul.mubr.f32.gmra.mxu0 %v235
        %v347 = vpop.f32.mrf.mxu0
        %v348 = vadd.f32 %v265, %v347
        %v349 = vpop.f32.mrf.mxu0
        %350 = vmatprep.mubr.f32.mxu0 0.0
        %351 = vmatmul.mubr.f32.gmra.mxu0 %v236
        %v352 = vpop.f32.mrf.mxu0
        %v353 = vadd.f32 %v265, %v352
        %v354 = vpop.f32.mrf.mxu0
        %355 = vmatprep.mubr.f32.mxu0 0.0
        %356 = vmatmul.mubr.f32.gmra.mxu0 %v237
        %v357 = vpop.f32.mrf.mxu0
        %v358 = vadd.f32 %v265, %v357
        %v359 = vpop.f32.mrf.mxu0
        %360 = vmatprep.mubr.f32.mxu0 0.0
        %361 = vmatmul.mubr.f32.gmra.mxu0 %v238
        %v362 = vpop.f32.mrf.mxu0
        %v363 = vadd.f32 %v265, %v362
        %v364 = vpop.f32.mrf.mxu0
        %365 = vmatprep.mubr.f32.mxu0 0.0
        %366 = vmatmul.mubr.f32.gmra.mxu0 %v239
        %v367 = vpop.f32.mrf.mxu0
        %v368 = vadd.f32 %v265, %v367
        %v369 = vpop.f32.mrf.mxu0
        %370 = vmatprep.mubr.f32.mxu0 0.0
        %371 = vmatmul.mubr.f32.gmra.mxu0 %v240
        %v372 = vpop.f32.mrf.mxu0
        %v373 = vadd.f32 %v265, %v372
        %v374 = vpop.f32.mrf.mxu0
        %375 = vmatprep.mubr.f32.mxu0 0.0
        %376 = vmatmul.mubr.f32.gmra.mxu0 %v241
        %v377 = vpop.f32.mrf.mxu0
        %v378 = vadd.f32 %v265, %v377
        %v379 = vpop.f32.mrf.mxu0
        %380 = vmatprep.mubr.f32.mxu0 0.0
        %381 = vmatmul.mubr.f32.gmra.mxu0 %v242
        %v382 = vpop.f32.mrf.mxu0
        %v383 = vadd.f32 %v265, %v382
        %v384 = vpop.f32.mrf.mxu0
        %385 = vmatprep.mubr.f32.mxu0 0.0
        %386 = vmatmul.mubr.f32.gmra.mxu0 %v243
        %v387 = vpop.f32.mrf.mxu0
        %v388 = vadd.f32 %v265, %v387
        %v389 = vpop.f32.mrf.mxu0
        %390 = vmatprep.mubr.f32.mxu0 0.0
        %391 = vmatmul.mubr.f32.gmra.mxu0 %v244
        %v392 = vpop.f32.mrf.mxu0
        %v393 = vadd.f32 %v265, %v392
        %v394 = vpop.f32.mrf.mxu0
        %395 = vdwg.mxu0
        %v396 = vmax.f32 %v333, 0.0
        %v397 = vmax.f32 %v338, 0.0
        %v398 = vmax.f32 %v343, 0.0
        %v399 = vmax.f32 %v348, 0.0
        %v400 = vmax.f32 %v353, 0.0
        %v401 = vmax.f32 %v358, 0.0
        %v402 = vmax.f32 %v363, 0.0
        %v403 = vmax.f32 %v368, 0.0
        %v404 = vmax.f32 %v373, 0.0
        %v405 = vmax.f32 %v378, 0.0
        %v406 = vmax.f32 %v383, 0.0
        %v407 = vmax.f32 %v388, 0.0
        %v408 = vmax.f32 %v393, 0.0
        %409 = vadd.xlane.f32.xlu0 %v396
        %v410 = vpop.xlane.xlu0 %409
        %411 = vadd.xlane.f32.xlu0 %v397
        %v412 = vpop.xlane.xlu0 %411
        %413 = vadd.xlane.f32.xlu0 %v398
        %v414 = vpop.xlane.xlu0 %413
        %415 = vadd.xlane.f32.xlu0 %v399
        %v416 = vpop.xlane.xlu0 %415
        %417 = vadd.xlane.f32.xlu0 %v400
        %v418 = vpop.xlane.xlu0 %417
        %419 = vadd.xlane.f32.xlu0 %v401
        %v420 = vpop.xlane.xlu0 %419
        %421 = vadd.xlane.f32.xlu0 %v402
        %v422 = vpop.xlane.xlu0 %421
        %423 = vadd.xlane.f32.xlu0 %v403
        %v424 = vpop.xlane.xlu0 %423
        %425 = vadd.xlane.f32.xlu0 %v404
        %v426 = vpop.xlane.xlu0 %425
        %427 = vadd.xlane.f32.xlu0 %v405
        %v428 = vpop.xlane.xlu0 %427
        %429 = vadd.xlane.f32.xlu0 %v406
        %v430 = vpop.xlane.xlu0 %429
        %431 = vadd.xlane.f32.xlu0 %v407
        %v432 = vpop.xlane.xlu0 %431
        %433 = vadd.xlane.f32.xlu0 %v408
        %v434 = vpop.xlane.xlu0 %433
        %v435 = vmul.f32 %v410, 0.0078125
        %v436 = vmul.f32 %v412, 0.0078125
        %v437 = vmul.f32 %v414, 0.0078125
        %v438 = vmul.f32 %v416, 0.0078125
        %v439 = vmul.f32 %v418, 0.0078125
        %v440 = vmul.f32 %v420, 0.0078125
        %v441 = vmul.f32 %v422, 0.0078125
        %v442 = vmul.f32 %v424, 0.0078125
        %v443 = vmul.f32 %v426, 0.0078125
        %v444 = vmul.f32 %v428, 0.0078125
        %v445 = vmul.f32 %v430, 0.0078125
        %v446 = vmul.f32 %v432, 0.0078125
        %v447 = vmul.f32 %v434, 0.0078125
        %v448 = vsub.f32 %v396, %v435
        %v449 = vsub.f32 %v397, %v436
        %v450 = vsub.f32 %v398, %v437
        %v451 = vsub.f32 %v399, %v438
        %v452 = vsub.f32 %v400, %v439
        %v453 = vsub.f32 %v401, %v440
        %v454 = vsub.f32 %v402, %v441
        %v455 = vsub.f32 %v403, %v442
        %v456 = vsub.f32 %v404, %v443
        %v457 = vsub.f32 %v405, %v444
        %v458 = vsub.f32 %v406, %v445
        %v459 = vsub.f32 %v407, %v446
        %v460 = vsub.f32 %v408, %v447
        %v461 = vmul.f32 %v448, %v448
        %v462 = vmul.f32 %v449, %v449
        %v463 = vmul.f32 %v450, %v450
        %v464 = vmul.f32 %v451, %v451
        %v465 = vmul.f32 %v452, %v452
        %v466 = vmul.f32 %v453, %v453
        %v467 = vmul.f32 %v454, %v454
        %v468 = vmul.f32 %v455, %v455
        %v469 = vmul.f32 %v456, %v456
        %v470 = vmul.f32 %v457, %v457
        %v471 = vmul.f32 %v458, %v458
        %v472 = vmul.f32 %v459, %v459
        %v473 = vmul.f32 %v460, %v460
        %474 = vadd.xlane.f32.xlu0 %v461
        %v475 = vpop.xlane.xlu0 %474
        %476 = vadd.xlane.f32.xlu0 %v462
        %v477 = vpop.xlane.xlu0 %476
        %478 = vadd.xlane.f32.xlu0 %v463
        %v479 = vpop.xlane.xlu0 %478
        %480 = vadd.xlane.f32.xlu0 %v464
        %v481 = vpop.xlane.xlu0 %480
        %482 = vadd.xlane.f32.xlu0 %v465
        %v483 = vpop.xlane.xlu0 %482
        %484 = vadd.xlane.f32.xlu0 %v466
        %v485 = vpop.xlane.xlu0 %484
        %486 = vadd.xlane.f32.xlu0 %v467
        %v487 = vpop.xlane.xlu0 %486
        %488 = vadd.xlane.f32.xlu0 %v468
        %v489 = vpop.xlane.xlu0 %488
        %490 = vadd.xlane.f32.xlu0 %v469
        %v491 = vpop.xlane.xlu0 %490
        %492 = vadd.xlane.f32.xlu0 %v470
        %v493 = vpop.xlane.xlu0 %492
        %494 = vadd.xlane.f32.xlu0 %v471
        %v495 = vpop.xlane.xlu0 %494
        %496 = vadd.xlane.f32.xlu0 %v472
        %v497 = vpop.xlane.xlu0 %496
        %498 = vadd.xlane.f32.xlu0 %v473
        %v499 = vpop.xlane.xlu0 %498
        %v500 = vmul.f32 %v475, 0.0078125
        %v501 = vmul.f32 %v477, 0.0078125
        %v502 = vmul.f32 %v479, 0.0078125
        %v503 = vmul.f32 %v481, 0.0078125
        %v504 = vmul.f32 %v483, 0.0078125
        %v505 = vmul.f32 %v485, 0.0078125
        %v506 = vmul.f32 %v487, 0.0078125
        %v507 = vmul.f32 %v489, 0.0078125
        %v508 = vmul.f32 %v491, 0.0078125
        %v509 = vmul.f32 %v493, 0.0078125
        %v510 = vmul.f32 %v495, 0.0078125
        %v511 = vmul.f32 %v497, 0.0078125
        %v512 = vmul.f32 %v499, 0.0078125
        %v513 = vadd.f32 %v500, 1e-05
        %v514 = vadd.f32 %v501, 1e-05
        %v515 = vadd.f32 %v502, 1e-05
        %v516 = vadd.f32 %v503, 1e-05
        %v517 = vadd.f32 %v504, 1e-05
        %v518 = vadd.f32 %v505, 1e-05
        %v519 = vadd.f32 %v506, 1e-05
        %v520 = vadd.f32 %v507, 1e-05
        %v521 = vadd.f32 %v508, 1e-05
        %v522 = vadd.f32 %v509, 1e-05
        %v523 = vadd.f32 %v510, 1e-05
        %v524 = vadd.f32 %v511, 1e-05
        %v525 = vadd.f32 %v512, 1e-05
        %v526 = vrsqrt.pop %v513
        %v527 = vrsqrt.pop %v514
        %v528 = vrsqrt.pop %v515
        %v529 = vrsqrt.pop %v516
        %v530 = vrsqrt.pop %v517
        %v531 = vrsqrt.pop %v518
        %v532 = vrsqrt.pop %v519
        %v533 = vrsqrt.pop %v520
        %v534 = vrsqrt.pop %v521
        %v535 = vrsqrt.pop %v522
        %v536 = vrsqrt.pop %v523
        %v537 = vrsqrt.pop %v524
        %v538 = vrsqrt.pop %v525
        %v539 = vld [vmem:[#allocation7 + $0x1] sm:$0x1]
        %v540 = vld [vmem:[#allocation7 + $0x2] sm:$0x1]
        %v541 = vmul.f32 %v448, %v526
        %v542 = vmul.f32 %v449, %v527
        %v543 = vmul.f32 %v450, %v528
        %v544 = vmul.f32 %v451, %v529
        %v545 = vmul.f32 %v452, %v530
        %v546 = vmul.f32 %v453, %v531
        %v547 = vmul.f32 %v454, %v532
        %v548 = vmul.f32 %v455, %v533
        %v549 = vmul.f32 %v456, %v534
        %v550 = vmul.f32 %v457, %v535
        %v551 = vmul.f32 %v458, %v536
        %v552 = vmul.f32 %v459, %v537
        %v553 = vmul.f32 %v460, %v538
        %v554 = vlaneseq
        %v555 = vshrl.u32 %v554, 7
        %v556 = vsub.s32 0, %v555
        %v557 = vrot.slane %v539, %v556
        %v558 = vmul.f32 %v541, %v557
        %v559 = vmul.f32 %v542, %v557
        %v560 = vmul.f32 %v543, %v557
        %v561 = vmul.f32 %v544, %v557
        %v562 = vmul.f32 %v545, %v557
        %v563 = vmul.f32 %v546, %v557
        %v564 = vmul.f32 %v547, %v557
        %v565 = vmul.f32 %v548, %v557
        %v566 = vmul.f32 %v549, %v557
        %v567 = vmul.f32 %v550, %v557
        %v568 = vmul.f32 %v551, %v557
        %v569 = vmul.f32 %v552, %v557
        %v570 = vmul.f32 %v553, %v557
        %v571 = vlaneseq
        %v572 = vshrl.u32 %v571, 7
        %v573 = vsub.s32 0, %v572
        %v574 = vrot.slane %v540, %v573
        %v575 = vadd.f32 %v558, %v574
        %v576 = vadd.f32 %v559, %v574
        %v577 = vadd.f32 %v560, %v574
        %v578 = vadd.f32 %v561, %v574
        %v579 = vadd.f32 %v562, %v574
        %v580 = vadd.f32 %v563, %v574
        %v581 = vadd.f32 %v564, %v574
        %v582 = vadd.f32 %v565, %v574
        %v583 = vadd.f32 %v566, %v574
        %v584 = vadd.f32 %v567, %v574
        %v585 = vadd.f32 %v568, %v574
        %v586 = vadd.f32 %v569, %v574
        %v587 = vadd.f32 %v570, %v574
        %588 = vst [vmem:[%s221] sm:$0xff] %v575
        %589 = vst [vmem:[%s221 + $0x8] sm:$0xff] %v576
        %590 = vst [vmem:[%s221 + $0x10] sm:$0xff] %v577
        %591 = vst [vmem:[%s221 + $0x18] sm:$0xff] %v578
        %592 = vst [vmem:[%s221 + $0x20] sm:$0xff] %v579
        %593 = vst [vmem:[%s221 + $0x28] sm:$0xff] %v580
        %594 = vst [vmem:[%s221 + $0x30] sm:$0xff] %v581
        %595 = vst [vmem:[%s221 + $0x38] sm:$0xff] %v582
        %596 = vst [vmem:[%s221 + $0x40] sm:$0xff] %v583
        %597 = vst [vmem:[%s221 + $0x48] sm:$0xff] %v584
        %598 = vst [vmem:[%s221 + $0x50] sm:$0xff] %v585
        %599 = vst [vmem:[%s221 + $0x58] sm:$0xff] %v586
        %600 = vst [vmem:[%s221 + $0x60] sm:$0xff] %v587
        %s601 = sand.u32 %s97, 1
        %s602 = scalar_lea.sflag [#allocation4], %s601
        %s603 = sand.u32 %s97, 1
        %s604 = smul.addr %s603, 104
        %s605 = scalar_lea.vmem [#allocation8], %s604
        // Predicated region
        $region45: #{tpu_custom_call.1} parent=31 // pred_check
          %p606 = pneg %p107
        $region46: #{tpu_custom_call.1} parent=31 // pred_check_branch
          %608 = sbr.rel (%p606) target = $region48
        $region47: #{tpu_custom_call.1} parent=31 // pred_region
          %s609 = smul.u32 13, %s21
          %s610 = ssub.s32 50, %s609
          %p611 = scmp.lt.s32.totalorder %s610, 13
          %s612 = scalar_select %p611, %s610, 13
          %s613 = smul.u32 128, %s612
          %s615 = ssub.s32 1664, %s613
          %616 = vsyncadd %s602, %s615
          %p617 = scmp.ne.s32.totalorder 0, %s613
          %s618 = smul.addr %s609, 128
          %s619 = scalar_lea.hbm %s3, %s618
          %s620 = smul.u32 8, %s612
          %s621 = sshll.u32 %s605, 4
          %s622 = int_to_ptr.vmem [resolvable:$true] %s621
          %s623 = sshll.u32 %s620, 4
          %627 = dma.vmem_to_hbm [thread:$0]  (%p617), %s622, %s623, %s619, %s602, 128, 128, 8
        $region48: #{tpu_custom_call.1} parent=31 // pred_fallthru
          _
      $region32: #{tpu_custom_call.1} parent=5 // pred_fallthru
        _
      %p628 = scmp.le.s32.totalorder 2, %s16
      // Predicated region
      $region49: #{tpu_custom_call.1} parent=5 // pred_check
        %p629 = pneg %p628
      $region50: #{tpu_custom_call.1} parent=5 // pred_check_branch
        %631 = sbr.rel (%p629) target = $region52
      $region51: #{tpu_custom_call.1} parent=5 // pred_region
        %s632 = ssub.s32 %s16, 2
        // Predicated region
        $region53: #{tpu_custom_call.1} parent=51 // pred_check
          %p633 = pneg %p113
        $region54: #{tpu_custom_call.1} parent=51 // pred_check_branch
          %635 = sbr.rel (%p633) target = $region56
        $region55: #{tpu_custom_call.1} parent=51 // pred_region
          %s636 = sand.u32 %s98, 1
          %s637 = scalar_lea.sflag [#allocation4], %s636
          %s638 = sand.u32 %s98, 1
          %s639 = smul.addr %s638, 104
          %s640 = scalar_lea.vmem [#allocation8], %s639
          %641 = dma.done %s637, 1664
        $region56: #{tpu_custom_call.1} parent=51 // pred_fallthru
          _
      $region52: #{tpu_custom_call.1} parent=5 // pred_fallthru
        _
    $region6: #{tpu_custom_call.1} parent=1 // loop_footer
      %s20 = sadd.s32 1, %s16
    $region7: #{tpu_custom_call.1} parent=1 // loop_footer_branch
      %15 = sbr.rel target = $region3
    $region8: #{tpu_custom_call.1} parent=1 // loop_exit
      _
    %642 = vsyncpa [#allocation3], 1
    %s643 = scalar_lea.sflag [#allocation3], 1
    %644 = vsyncpa %s643, 1
    %645 = vsyncpa [#allocation6], 1
    %646 = vsyncpa [#allocation4], 1
    %s647 = scalar_lea.sflag [#allocation4], 1
    %648 = vsyncpa %s647, 1

</llo_original>
